<compile_context>
chip_gen: v7x
topology: tpu7x:2x2x1
jax: 0.10.0
libtpu: 0.0.40
codegen_flags: <defaults>
</compile_context>

<pallas_src>
import functools

import jax
import jax.numpy as jnp
from jax.experimental import pallas as pl
from jax.experimental.pallas import tpu as pltpu

LN_EPS = 1e-5  # torch.nn.LayerNorm default


def _layernorm(x, gamma, beta):
    """LayerNorm over the last (lane) axis in f32. x:(tm,D), gamma/beta:(1,D)."""
    mean = jnp.mean(x, axis=-1, keepdims=True)
    centered = x - mean
    var = jnp.mean(centered * centered, axis=-1, keepdims=True)
    return centered * jax.lax.rsqrt(var + LN_EPS) * gamma + beta


def _decoder_stack_kernel(x_ref, g_ref, b_ref, w_ref, bias_ref, fg_ref, fb_ref,
                          o_ref, acc_ref):
    # Grid: (token_tile i, layer l). Per invocation:
    #   x_ref:    (tm, D)     token tile (only read at l == 0)
    #   g/b_ref:  (1, 1, D)   layer-l LayerNorm affine
    #   w_ref:    (1, D, D)   layer-l Linear weight, (in, out) layout, bf16
    #   bias_ref: (1, 1, D)   layer-l Linear bias
    #   fg/fb:    (1, D)      Decoder.norm affine (read only at the last layer)
    #   acc_ref:  (tm, D) f32 VMEM scratch holding x across the layer axis
    l = pl.program_id(1)

    @pl.when(l == 0)
    def _():
        acc_ref[...] = x_ref[...].astype(jnp.float32)

    x = acc_ref[...]
    y = _layernorm(x, g_ref[0], b_ref[0])
    # bf16 operands into the MXU, f32 accumulation.
    sub = jnp.dot(y.astype(jnp.bfloat16), w_ref[0],
                  preferred_element_type=jnp.float32) + bias_ref[0]
    # Dropout in eval mode == identity; residual add.
    x = x + sub
    acc_ref[...] = x

    @pl.when(l == pl.num_programs(1) - 1)
    def _():
        # Decoder's own final LayerNorm fused into the last layer's pass.
        o_ref[...] = _layernorm(x, fg_ref[...], fb_ref[...]).astype(o_ref.dtype)


@functools.partial(jax.jit, static_argnames=("tm",))
def _decoder_stack_call(x2, gammas, betas, ws, biases, fgamma, fbeta, *, tm):
    T, D = x2.shape
    L = ws.shape[0]
    grid = (pl.cdiv(T, tm), L)

    # VMEM budget: acc scratch + double-buffered x/out tiles + double-buffered
    # weight tile + small vectors, 2x headroom, clamped to [32 MiB, 64 MiB]
    # (64 MiB = v7x per-core VMEM).
    tile_bytes = (tm * D * 4                                  # acc scratch (f32)
                  + 2 * 2 * tm * D * x2.dtype.itemsize        # x + out, 2 buffers each
                  + 2 * D * D * ws.dtype.itemsize             # weight, 2 buffers
                  + 2 * 8 * D * 4)                            # LN/bias vectors
    vmem_limit = int(min(max(2 * tile_bytes, 32 * 2**20), 64 * 2**20))

    return pl.pallas_call(
        _decoder_stack_kernel,
        out_shape=jax.ShapeDtypeStruct((T, D), x2.dtype),
        grid_spec=pltpu.PrefetchScalarGridSpec(
            num_scalar_prefetch=0,
            grid=grid,
            in_specs=[
                pl.BlockSpec((tm, D), lambda i, l: (i, 0)),      # x token tile
                pl.BlockSpec((1, 1, D), lambda i, l: (l, 0, 0)),  # layer LN gamma
                pl.BlockSpec((1, 1, D), lambda i, l: (l, 0, 0)),  # layer LN beta
                pl.BlockSpec((1, D, D), lambda i, l: (l, 0, 0)),  # layer weight (bf16)
                pl.BlockSpec((1, 1, D), lambda i, l: (l, 0, 0)),  # layer bias
                pl.BlockSpec((1, D), lambda i, l: (0, 0)),        # final norm gamma
                pl.BlockSpec((1, D), lambda i, l: (0, 0)),        # final norm beta
            ],
            out_specs=pl.BlockSpec((tm, D), lambda i, l: (i, 0)),
            scratch_shapes=[pltpu.VMEM((tm, D), jnp.float32)],
        ),
        compiler_params=pltpu.CompilerParams(
            # token tiles independent -> megacore; layer axis is a carried chain.
            dimension_semantics=("parallel", "arbitrary"),
            vmem_limit_bytes=vmem_limit,
        ),
    )(x2, gammas, betas, ws, biases, fgamma, fbeta)


def decoder_forward(x, enc_out, src_mask, tgt_mask, params, *, tm=None):
    """Pallas implementation of Decoder.forward: layer stack then final LayerNorm."""
    del enc_out, src_mask, tgt_mask  # consumed only by opaque attention sublayers
    B, S, D = x.shape
    layers = params["layers"]
    L = len(layers)
    assert L >= 1

    T = B * S
    if tm is None:
        tm = min(T, 256)              # multi-step grid: pipelining + megacore
    if tm < T:
        tm = max(8, (tm // 8) * 8)    # sublane-aligned row tiles

    # Stack per-layer parameters so the layer grid axis indexes them directly.
    gammas = jnp.stack([lp["ln_gamma"] for lp in layers]).reshape(L, 1, D)
    betas = jnp.stack([lp["ln_beta"] for lp in layers]).reshape(L, 1, D)
    ws = jnp.stack([lp["w"] for lp in layers])                 # (L, D, D) bf16
    biases = jnp.stack([lp["b"] for lp in layers]).reshape(L, 1, D)
    fgamma = params["final_gamma"].reshape(1, D)
    fbeta = params["final_beta"].reshape(1, D)

    x2 = x.reshape(T, D)  # tokens-major: d_model on the lane axis
    out = _decoder_stack_call(x2, gammas, betas, ws, biases, fgamma, fbeta, tm=tm)
    return out.reshape(B, S, D)


def reference_decoder(x, params):
    """Pure-JAX reference with the same (bf16 matmul, f32 accumulate) numerics."""
    def ln(v, g, b):
        m = jnp.mean(v, axis=-1, keepdims=True)
        var = jnp.mean((v - m) ** 2, axis=-1, keepdims=True)
        return (v - m) * jax.lax.rsqrt(var + LN_EPS) * g + b

    xf = x.astype(jnp.float32)
    for lp in params["layers"]:
        y = ln(xf, lp["ln_gamma"], lp["ln_beta"])
        sub = jnp.dot(y.astype(jnp.bfloat16), lp["w"],
                      preferred_element_type=jnp.float32) + lp["b"]
        xf = xf + sub
    return ln(xf, params["final_gamma"], params["final_beta"]).astype(x.dtype)


if __name__ == "__main__":
    # Small but TPU-friendly shapes: d_model multiple of 128 (lane-dense),
    # batch*seq = 512 tokens -> tm=256 gives a 2-step "parallel" grid.
    batch, seq, d_model, n_layers = 2, 256, 128, 2

    key = jax.random.PRNGKey(0)
    kx, *lkeys = jax.random.split(key, 1 + 2 * n_layers)

    x = jax.random.normal(kx, (batch, seq, d_model), dtype=jnp.float32)

    layers = []
    for li in range(n_layers):
        kw, kb = lkeys[2 * li], lkeys[2 * li + 1]
        layers.append(dict(
            ln_gamma=jnp.ones((d_model,), jnp.float32),   # nn.LayerNorm weight init
            ln_beta=jnp.zeros((d_model,), jnp.float32),   # nn.LayerNorm bias init
            # Sublayer Linear(d_model, d_model); stored (in, out) so y @ w; bf16 MXU.
            w=(jax.random.normal(kw, (d_model, d_model), jnp.float32)
               * (1.0 / d_model ** 0.5)).astype(jnp.bfloat16),
            b=jax.random.normal(kb, (d_model,), jnp.float32) * 0.01,
        ))
    params = dict(
        layers=layers,
        final_gamma=jnp.ones((d_model,), jnp.float32),
        final_beta=jnp.zeros((d_model,), jnp.float32),
    )

    # enc_out / masks are consumed only by real attention sublayers (opaque in spec).
    out = decoder_forward(x, None, None, None, params)
    out = jax.block_until_ready(out)

    ref = reference_decoder(x, params)
    assert out.shape == x.shape
    assert jnp.allclose(out, ref, atol=5e-3, rtol=5e-3), "mismatch vs reference"
    print("KERNEL_OK")
</pallas_src>

<mosaic_0001>
module attributes {stable_mosaic.version = 11 : i64} {
  func.func @_decoder_stack_kernel(%arg0: i32, %arg1: i32, %arg2: memref<256x128xf32, #tpu.memory_space<vmem>>, %arg3: memref<1x1x128xf32, #tpu.memory_space<vmem>>, %arg4: memref<1x1x128xf32, #tpu.memory_space<vmem>>, %arg5: memref<1x128x128xbf16, #tpu.memory_space<vmem>>, %arg6: memref<1x1x128xf32, #tpu.memory_space<vmem>>, %arg7: memref<1x128xf32, #tpu.memory_space<vmem>>, %arg8: memref<1x128xf32, #tpu.memory_space<vmem>>, %arg9: memref<256x128xf32, #tpu.memory_space<vmem>>, %arg10: memref<256x128xf32, #tpu.memory_space<vmem>>) attributes {dimension_semantics = [#tpu.dimension_semantics<parallel>, #tpu.dimension_semantics<arbitrary>], iteration_bounds = array<i64: 2, 2>, scalar_prefetch = 0 : i64, scratch_operands = 1 : i64, tpu.core_type = #tpu.core_type<tc>, window_params = [{transform_indices = @transform_0, window_bounds = array<i64: 256, 128>}, {transform_indices = @transform_1, window_bounds = array<i64: 1, 1, 128>}, {transform_indices = @transform_2, window_bounds = array<i64: 1, 1, 128>}, {transform_indices = @transform_3, window_bounds = array<i64: 1, 128, 128>}, {transform_indices = @transform_4, window_bounds = array<i64: 1, 1, 128>}, {pipeline_mode = #tpu.pipeline_mode<synchronous>, transform_indices = @transform_5, window_bounds = array<i64: 1, 128>}, {pipeline_mode = #tpu.pipeline_mode<synchronous>, transform_indices = @transform_6, window_bounds = array<i64: 1, 128>}, {transform_indices = @transform_7, window_bounds = array<i64: 256, 128>}]} {
    %c0_i32 = arith.constant 0 : i32
    %0 = arith.cmpi eq, %arg1, %c0_i32 : i32
    %1 = arith.extui %0 : i1 to i32
    %c0_i32_0 = arith.constant 0 : i32
    %2 = arith.cmpi ne, %1, %c0_i32_0 : i32
    scf.if %2 {
      %c0_22 = arith.constant 0 : index
      %c0_23 = arith.constant 0 : index
      %41 = vector.load %arg2[%c0_22, %c0_23] : memref<256x128xf32, #tpu.memory_space<vmem>>, vector<256x128xf32>
      %c0_24 = arith.constant 0 : index
      %c0_25 = arith.constant 0 : index
      %42 = vector.load %arg10[%c0_24, %c0_25] : memref<256x128xf32, #tpu.memory_space<vmem>>, vector<256x128xf32>
      tpu.vector_store %arg10[%c0_24, %c0_25], %41 {strides = array<i32>} : memref<256x128xf32, #tpu.memory_space<vmem>>, vector<256x128xf32>,
    } else {
    }
    %c0 = arith.constant 0 : index
    %c0_1 = arith.constant 0 : index
    %3 = vector.load %arg10[%c0, %c0_1] : memref<256x128xf32, #tpu.memory_space<vmem>>, vector<256x128xf32>
    %c0_2 = arith.constant 0 : index
    %c0_3 = arith.constant 0 : index
    %c0_4 = arith.constant 0 : index
    %4 = vector.load %arg3[%c0_2, %c0_3, %c0_4] : memref<1x1x128xf32, #tpu.memory_space<vmem>>, vector<1x1x128xf32>
    %5 = vector.shape_cast %4 : vector<1x1x128xf32> to vector<1x128xf32>
    %c0_5 = arith.constant 0 : index
    %c0_6 = arith.constant 0 : index
    %c0_7 = arith.constant 0 : index
    %6 = vector.load %arg4[%c0_5, %c0_6, %c0_7] : memref<1x1x128xf32, #tpu.memory_space<vmem>>, vector<1x1x128xf32>
    %7 = vector.shape_cast %6 : vector<1x1x128xf32> to vector<1x128xf32>
    %cst = arith.constant dense<0.000000e+00> : vector<256xf32>
    %8 = vector.multi_reduction <add>, %3, %cst [1] : vector<256x128xf32> to vector<256xf32>
    %9 = vector.shape_cast %8 : vector<256xf32> to vector<256x1xf32>
    %cst_8 = arith.constant 1.280000e+02 : f32
    %10 = vector.broadcast %cst_8 : f32 to vector<256x1xf32>
    %11 = arith.divf %9, %10 : vector<256x1xf32>
    %12 = vector.broadcast %11 : vector<256x1xf32> to vector<256x128xf32>
    %13 = arith.subf %3, %12 : vector<256x128xf32>
    %14 = arith.mulf %13, %13 : vector<256x128xf32>
    %cst_9 = arith.constant dense<0.000000e+00> : vector<256xf32>
    %15 = vector.multi_reduction <add>, %14, %cst_9 [1] : vector<256x128xf32> to vector<256xf32>
    %16 = vector.shape_cast %15 : vector<256xf32> to vector<256x1xf32>
    %cst_10 = arith.constant 1.280000e+02 : f32
    %17 = vector.broadcast %cst_10 : f32 to vector<256x1xf32>
    %18 = arith.divf %16, %17 : vector<256x1xf32>
    %cst_11 = arith.constant 9.99999974E-6 : f32
    %19 = vector.broadcast %cst_11 : f32 to vector<256x1xf32>
    %20 = arith.addf %18, %19 : vector<256x1xf32>
    %21 = math.rsqrt %20 : vector<256x1xf32>
    %22 = vector.broadcast %21 : vector<256x1xf32> to vector<256x128xf32>
    %23 = arith.mulf %13, %22 : vector<256x128xf32>
    %24 = vector.broadcast %5 : vector<1x128xf32> to vector<256x128xf32>
    %25 = arith.mulf %23, %24 : vector<256x128xf32>
    %26 = vector.broadcast %7 : vector<1x128xf32> to vector<256x128xf32>
    %27 = arith.addf %25, %26 : vector<256x128xf32>
    %28 = arith.truncf %27 : vector<256x128xf32> to vector<256x128xbf16>
    %c0_12 = arith.constant 0 : index
    %c0_13 = arith.constant 0 : index
    %c0_14 = arith.constant 0 : index
    %29 = vector.load %arg5[%c0_12, %c0_13, %c0_14] : memref<1x128x128xbf16, #tpu.memory_space<vmem>>, vector<1x128x128xbf16>
    %30 = vector.shape_cast %29 : vector<1x128x128xbf16> to vector<128x128xbf16>
    %cst_15 = arith.constant dense<0.000000e+00> : vector<256x128xf32>
    %31 = tpu.matmul %28, %30, %cst_15 {dimension_numbers = #tpu.dot_dimension_numbers<[1], [0], [0], [1], [0, 0, 1, 1], [], []>} : vector<256x128xbf16>, vector<128x128xbf16>, vector<256x128xf32> -> vector<256x128xf32>
    %c0_16 = arith.constant 0 : index
    %c0_17 = arith.constant 0 : index
    %c0_18 = arith.constant 0 : index
    %32 = vector.load %arg6[%c0_16, %c0_17, %c0_18] : memref<1x1x128xf32, #tpu.memory_space<vmem>>, vector<1x1x128xf32>
    %33 = vector.shape_cast %32 : vector<1x1x128xf32> to vector<1x128xf32>
    %34 = vector.broadcast %33 : vector<1x128xf32> to vector<256x128xf32>
    %35 = arith.addf %31, %34 : vector<256x128xf32>
    %36 = arith.addf %3, %35 : vector<256x128xf32>
    %c0_19 = arith.constant 0 : index
    %c0_20 = arith.constant 0 : index
    %37 = vector.load %arg10[%c0_19, %c0_20] : memref<256x128xf32, #tpu.memory_space<vmem>>, vector<256x128xf32>
    tpu.vector_store %arg10[%c0_19, %c0_20], %36 {strides = array<i32>} : memref<256x128xf32, #tpu.memory_space<vmem>>, vector<256x128xf32>,
    %c1_i32 = arith.constant 1 : i32
    %38 = arith.cmpi eq, %arg1, %c1_i32 : i32
    %39 = arith.extui %38 : i1 to i32
    %c0_i32_21 = arith.constant 0 : i32
    %40 = arith.cmpi ne, %39, %c0_i32_21 : i32
    scf.if %40 {
      %c0_22 = arith.constant 0 : index
      %c0_23 = arith.constant 0 : index
      %41 = vector.load %arg7[%c0_22, %c0_23] : memref<1x128xf32, #tpu.memory_space<vmem>>, vector<1x128xf32>
      %c0_24 = arith.constant 0 : index
      %c0_25 = arith.constant 0 : index
      %42 = vector.load %arg8[%c0_24, %c0_25] : memref<1x128xf32, #tpu.memory_space<vmem>>, vector<1x128xf32>
      %cst_26 = arith.constant dense<0.000000e+00> : vector<256xf32>
      %43 = vector.multi_reduction <add>, %36, %cst_26 [1] : vector<256x128xf32> to vector<256xf32>
      %44 = vector.shape_cast %43 : vector<256xf32> to vector<256x1xf32>
      %cst_27 = arith.constant 1.280000e+02 : f32
      %45 = vector.broadcast %cst_27 : f32 to vector<256x1xf32>
      %46 = arith.divf %44, %45 : vector<256x1xf32>
      %47 = vector.broadcast %46 : vector<256x1xf32> to vector<256x128xf32>
      %48 = arith.subf %36, %47 : vector<256x128xf32>
      %49 = arith.mulf %48, %48 : vector<256x128xf32>
      %cst_28 = arith.constant dense<0.000000e+00> : vector<256xf32>
      %50 = vector.multi_reduction <add>, %49, %cst_28 [1] : vector<256x128xf32> to vector<256xf32>
      %51 = vector.shape_cast %50 : vector<256xf32> to vector<256x1xf32>
      %cst_29 = arith.constant 1.280000e+02 : f32
      %52 = vector.broadcast %cst_29 : f32 to vector<256x1xf32>
      %53 = arith.divf %51, %52 : vector<256x1xf32>
      %cst_30 = arith.constant 9.99999974E-6 : f32
      %54 = vector.broadcast %cst_30 : f32 to vector<256x1xf32>
      %55 = arith.addf %53, %54 : vector<256x1xf32>
      %56 = math.rsqrt %55 : vector<256x1xf32>
      %57 = vector.broadcast %56 : vector<256x1xf32> to vector<256x128xf32>
      %58 = arith.mulf %48, %57 : vector<256x128xf32>
      %59 = vector.broadcast %41 : vector<1x128xf32> to vector<256x128xf32>
      %60 = arith.mulf %58, %59 : vector<256x128xf32>
      %61 = vector.broadcast %42 : vector<1x128xf32> to vector<256x128xf32>
      %62 = arith.addf %60, %61 : vector<256x128xf32>
      %c0_31 = arith.constant 0 : index
      %c0_32 = arith.constant 0 : index
      %63 = vector.load %arg9[%c0_31, %c0_32] : memref<256x128xf32, #tpu.memory_space<vmem>>, vector<256x128xf32>
      tpu.vector_store %arg9[%c0_31, %c0_32], %62 {strides = array<i32>} : memref<256x128xf32, #tpu.memory_space<vmem>>, vector<256x128xf32>,
    } else {
    }
    return
  }
  func.func @transform_0(%arg0: i32, %arg1: i32) -> (i32, i32) {
    %c0_i32 = arith.constant 0 : i32
    %c0_i32_0 = arith.constant 0 : i32
    return %arg0, %c0_i32 : i32, i32
  }
  func.func @transform_1(%arg0: i32, %arg1: i32) -> (i32, i32, i32) {
    %c0_i32 = arith.constant 0 : i32
    %c0_i32_0 = arith.constant 0 : i32
    %c0_i32_1 = arith.constant 0 : i32
    return %arg1, %c0_i32, %c0_i32_0 : i32, i32, i32
  }
  func.func @transform_2(%arg0: i32, %arg1: i32) -> (i32, i32, i32) {
    %c0_i32 = arith.constant 0 : i32
    %c0_i32_0 = arith.constant 0 : i32
    %c0_i32_1 = arith.constant 0 : i32
    return %arg1, %c0_i32, %c0_i32_0 : i32, i32, i32
  }
  func.func @transform_3(%arg0: i32, %arg1: i32) -> (i32, i32, i32) {
    %c0_i32 = arith.constant 0 : i32
    %c0_i32_0 = arith.constant 0 : i32
    %c0_i32_1 = arith.constant 0 : i32
    return %arg1, %c0_i32, %c0_i32_0 : i32, i32, i32
  }
  func.func @transform_4(%arg0: i32, %arg1: i32) -> (i32, i32, i32) {
    %c0_i32 = arith.constant 0 : i32
    %c0_i32_0 = arith.constant 0 : i32
    %c0_i32_1 = arith.constant 0 : i32
    return %arg1, %c0_i32, %c0_i32_0 : i32, i32, i32
  }
  func.func @transform_5(%arg0: i32, %arg1: i32) -> (i32, i32) {
    %c0_i32 = arith.constant 0 : i32
    %c0_i32_0 = arith.constant 0 : i32
    %c0_i32_1 = arith.constant 0 : i32
    return %c0_i32, %c0_i32_0 : i32, i32
  }
  func.func @transform_6(%arg0: i32, %arg1: i32) -> (i32, i32) {
    %c0_i32 = arith.constant 0 : i32
    %c0_i32_0 = arith.constant 0 : i32
    %c0_i32_1 = arith.constant 0 : i32
    return %c0_i32, %c0_i32_0 : i32, i32
  }
  func.func @transform_7(%arg0: i32, %arg1: i32) -> (i32, i32) {
    %c0_i32 = arith.constant 0 : i32
    %c0_i32_0 = arith.constant 0 : i32
    return %arg0, %c0_i32 : i32, i32
  }
}

</mosaic_0001>

<llo_original>
// kernel: _decoder_stack_call.1
$region0: #{_decoder_stack_call.1}
  #allocation0 [shape = 'u32[]', space=smem, size = 0x4, offset = 0x4, fixed_abs, tag = 'smem constant byte address 0x4 - core index']
  #allocation1 [shape = 'u32[144,128]{1,0:T(1,128)}', space=vmem, size = 0x12000, scoped, tag = 'internal scratch']
  #allocation2 [shape = 'f32[256,128]{1,0:T(8,128)}', space=vmem, size = 0x20000, scoped, tag = 'scratch operand']
  %s0 = inlined_call_operand.hbm [shape: f32[512,128], index: 0, kind: input, shape index: {}]
  %s1 = inlined_call_operand.vmem [shape: f32[2,1,128], index: 1, kind: input, shape index: {}]
  %s2 = inlined_call_operand.vmem [shape: f32[2,1,128], index: 2, kind: input, shape index: {}]
  %s3 = inlined_call_operand.hbm [shape: bf16[2,128,128], index: 3, kind: input, shape index: {}]
  %s4 = inlined_call_operand.vmem [shape: f32[2,1,128], index: 4, kind: input, shape index: {}]
  %s5 = inlined_call_operand.vmem [shape: f32[1,128], index: 5, kind: input, shape index: {}]
  %s6 = inlined_call_operand.vmem [shape: f32[1,128], index: 6, kind: input, shape index: {}]
  %s7 = inlined_call_operand.hbm [shape: f32[512,128], index: 7, kind: output, shape index: {}]
  %s8 = sld [smem:[#allocation0]]
  $region77: #{_decoder_stack_call.1} parent=0
    _
  %s10 = ssub.s32 1, %s8
  %s11 = scalar_select 0, %s10, %s8
  $region1: #{_decoder_stack_call.1} parent=0
    #allocation3 [shape = 'u8[262144]{0}', space=vmem, size = 0x40000, scoped, tag = 'input window, operand 0']
    #allocation4 [shape = 's32[2]{0}', space=sflag, size = 0x8, scoped, tag = 'scoped memory for _decoder_stack_call.1']
    #allocation5 [shape = 's32[2]{0}', space=sflag, size = 0x8, scoped, tag = 'scoped memory for _decoder_stack_call.1']
    #allocation6 [shape = 'u8[65536]{0}', space=vmem, size = 0x10000, scoped, tag = 'input window, operand 3']
    #allocation7 [shape = 's32[2]{0}', space=sflag, size = 0x8, scoped, tag = 'scoped memory for _decoder_stack_call.1']
    #allocation8 [shape = 'u8[262144]{0}', space=vmem, size = 0x40000, scoped, tag = 'output window, operand 0']
    %12 = vsyncpa [#allocation4], 0
    %s13 = scalar_lea.sflag [#allocation4], 1
    %14 = vsyncpa %s13, 0
    %15 = vsyncpa [#allocation7], 0
    %s16 = scalar_lea.sflag [#allocation7], 1
    %17 = vsyncpa %s16, 0
    %18 = vsyncpa [#allocation5], 0
    %s19 = scalar_lea.sflag [#allocation5], 1
    %20 = vsyncpa %s19, 0
    loop: start=0, step=1, limit=6
    $region2: #{_decoder_stack_call.1} parent=1 // loop_pre_header
      _
    $region3: #{_decoder_stack_call.1} parent=1 // loop_header
      %s22 = sphi 0, %s26
      %p23 = scmp.ge.s32.totalorder %s22, 6
      %s29 = sphi 0, %s41
      %s30 = sphi 0, %s37
      %s31 = sphi 0, %s29
      %s32 = sphi 0, %s30
      %s33 = sphi 0, %s31
      %s34 = sphi 0, %s32
      %s44 = sphi 0, %s46
      %s47 = sphi 0, %s44
      %s48 = sphi 0, %s47
      %s64 = sphi 0, %s48
      %s70 = sphi 0, %s72
      %s73 = sphi 0, %s70
      %s74 = sphi 0, %s73
      %s90 = sphi 0, %s74
      %s96 = sphi 0, %s98
      %s99 = sphi 0, %s96
      %s100 = sphi 0, %s99
      %s116 = sphi 0, %s100
      %s122 = sphi 0, %s124
      %s125 = sphi 0, %s122
      %s126 = sphi 0, %s125
      %s142 = sphi 0, %s126
      %s148 = sphi 0, %s150
      %s151 = sphi 0, %s148
      %s152 = sphi 0, %s151
      %s168 = sphi 0, %s152
      %s172 = sphi 0, %s172
      %s174 = sphi 0, %s172
      %s175 = sphi 0, %s174
      %s189 = sphi 0, %s175
      %s193 = sphi 0, %s193
      %s195 = sphi 0, %s193
      %s196 = sphi 0, %s195
      %s210 = sphi 0, %s196
      %s216 = sphi 0, %s218
      %s219 = sphi 0, %s216
      %s220 = sphi 0, %s219
      %s236 = sphi 0, %s220
    $region4: #{_decoder_stack_call.1} parent=1 // loop_header_branch
      %25 = sbr.rel (%p23) target = $region8
    $region5: #{_decoder_stack_call.1} parent=1 // loop_body
      %s27 = ssub.s32 %s22, 1
      %s28 = ssub.s32 %s22, 2
      %s35 = sadd.s32 1, %s30
      %p36 = scmp.ge.s32.totalorder %s35, 2
      %s37 = scalar_select %p36, 0, %s35
      %s38 = sadd.s32 1, %s29
      %s39 = scalar_select %p36, %s38, %s29
      %p40 = scmp.ge.s32.totalorder %s39, 2
      %s41 = scalar_select %p40, 0, %s39
      %s42 = ssub.s32 %s29, %s41
      %p43 = scmp.eq.s32.totalorder %s42, 0
      %s45 = sadd.s32 %s44, 1
      %s46 = scalar_select %p43, %s44, %s45
      %p49 = pneg %p43
      %p50 = scmp.eq.s32.totalorder %s22, 3
      %p51 = por %p49, %p50
      %p52 = scmp.ne.s32.totalorder %s44, %s47
      %p53 = scmp.eq.s32.totalorder %s22, 0
      %p54 = por %p52, %p53
      %p55 = scmp.ne.s32.totalorder %s44, %s47
      %p56 = scmp.eq.s32.totalorder %s27, 3
      %p57 = por %p55, %p56
      %p58 = scmp.ne.s32.totalorder %s47, %s48
      %p59 = scmp.eq.s32.totalorder %s27, 0
      %p60 = por %p58, %p59
      %p61 = scmp.ne.s32.totalorder %s47, %s48
      %p62 = scmp.eq.s32.totalorder %s28, 3
      %p63 = por %p61, %p62
      %p65 = scmp.ne.s32.totalorder %s48, %s64
      %p66 = scmp.eq.s32.totalorder %s28, 0
      %p67 = por %p65, %p66
      %s68 = ssub.s32 %s30, %s37
      %p69 = scmp.eq.s32.totalorder %s68, 0
      %s71 = sadd.s32 %s70, 1
      %s72 = scalar_select %p69, %s70, %s71
      %p75 = pneg %p69
      %p76 = scmp.eq.s32.totalorder %s22, 3
      %p77 = por %p75, %p76
      %p78 = scmp.ne.s32.totalorder %s70, %s73
      %p79 = scmp.eq.s32.totalorder %s22, 0
      %p80 = por %p78, %p79
      %p81 = scmp.ne.s32.totalorder %s70, %s73
      %p82 = scmp.eq.s32.totalorder %s27, 3
      %p83 = por %p81, %p82
      %p84 = scmp.ne.s32.totalorder %s73, %s74
      %p85 = scmp.eq.s32.totalorder %s27, 0
      %p86 = por %p84, %p85
      %p87 = scmp.ne.s32.totalorder %s73, %s74
      %p88 = scmp.eq.s32.totalorder %s28, 3
      %p89 = por %p87, %p88
      %p91 = scmp.ne.s32.totalorder %s74, %s90
      %p92 = scmp.eq.s32.totalorder %s28, 0
      %p93 = por %p91, %p92
      %s94 = ssub.s32 %s30, %s37
      %p95 = scmp.eq.s32.totalorder %s94, 0
      %s97 = sadd.s32 %s96, 1
      %s98 = scalar_select %p95, %s96, %s97
      %p101 = pneg %p95
      %p102 = scmp.eq.s32.totalorder %s22, 3
      %p103 = por %p101, %p102
      %p104 = scmp.ne.s32.totalorder %s96, %s99
      %p105 = scmp.eq.s32.totalorder %s22, 0
      %p106 = por %p104, %p105
      %p107 = scmp.ne.s32.totalorder %s96, %s99
      %p108 = scmp.eq.s32.totalorder %s27, 3
      %p109 = por %p107, %p108
      %p110 = scmp.ne.s32.totalorder %s99, %s100
      %p111 = scmp.eq.s32.totalorder %s27, 0
      %p112 = por %p110, %p111
      %p113 = scmp.ne.s32.totalorder %s99, %s100
      %p114 = scmp.eq.s32.totalorder %s28, 3
      %p115 = por %p113, %p114
      %p117 = scmp.ne.s32.totalorder %s100, %s116
      %p118 = scmp.eq.s32.totalorder %s28, 0
      %p119 = por %p117, %p118
      %s120 = ssub.s32 %s30, %s37
      %p121 = scmp.eq.s32.totalorder %s120, 0
      %s123 = sadd.s32 %s122, 1
      %s124 = scalar_select %p121, %s122, %s123
      %p127 = pneg %p121
      %p128 = scmp.eq.s32.totalorder %s22, 3
      %p129 = por %p127, %p128
      %p130 = scmp.ne.s32.totalorder %s122, %s125
      %p131 = scmp.eq.s32.totalorder %s22, 0
      %p132 = por %p130, %p131
      %p133 = scmp.ne.s32.totalorder %s122, %s125
      %p134 = scmp.eq.s32.totalorder %s27, 3
      %p135 = por %p133, %p134
      %p136 = scmp.ne.s32.totalorder %s125, %s126
      %p137 = scmp.eq.s32.totalorder %s27, 0
      %p138 = por %p136, %p137
      %p139 = scmp.ne.s32.totalorder %s125, %s126
      %p140 = scmp.eq.s32.totalorder %s28, 3
      %p141 = por %p139, %p140
      %p143 = scmp.ne.s32.totalorder %s126, %s142
      %p144 = scmp.eq.s32.totalorder %s28, 0
      %p145 = por %p143, %p144
      %s146 = ssub.s32 %s30, %s37
      %p147 = scmp.eq.s32.totalorder %s146, 0
      %s149 = sadd.s32 %s148, 1
      %s150 = scalar_select %p147, %s148, %s149
      %p153 = pneg %p147
      %p154 = scmp.eq.s32.totalorder %s22, 3
      %p155 = por %p153, %p154
      %p156 = scmp.ne.s32.totalorder %s148, %s151
      %p157 = scmp.eq.s32.totalorder %s22, 0
      %p158 = por %p156, %p157
      %p159 = scmp.ne.s32.totalorder %s148, %s151
      %p160 = scmp.eq.s32.totalorder %s27, 3
      %p161 = por %p159, %p160
      %p162 = scmp.ne.s32.totalorder %s151, %s152
      %p163 = scmp.eq.s32.totalorder %s27, 0
      %p164 = por %p162, %p163
      %p165 = scmp.ne.s32.totalorder %s151, %s152
      %p166 = scmp.eq.s32.totalorder %s28, 3
      %p167 = por %p165, %p166
      %p169 = scmp.ne.s32.totalorder %s152, %s168
      %p170 = scmp.eq.s32.totalorder %s28, 0
      %p171 = por %p169, %p170
      %s173 = sadd.s32 %s172, 1
      %p176 = scmp.eq.s32.totalorder %s22, 3
      %p177 = scmp.ne.s32.totalorder %s172, %s174
      %p178 = scmp.eq.s32.totalorder %s22, 0
      %p179 = por %p177, %p178
      %p180 = scmp.ne.s32.totalorder %s172, %s174
      %p181 = scmp.eq.s32.totalorder %s27, 3
      %p182 = por %p180, %p181
      %p183 = scmp.ne.s32.totalorder %s174, %s175
      %p184 = scmp.eq.s32.totalorder %s27, 0
      %p185 = por %p183, %p184
      %p186 = scmp.ne.s32.totalorder %s174, %s175
      %p187 = scmp.eq.s32.totalorder %s28, 3
      %p188 = por %p186, %p187
      %p190 = scmp.ne.s32.totalorder %s175, %s189
      %p191 = scmp.eq.s32.totalorder %s28, 0
      %p192 = por %p190, %p191
      %s194 = sadd.s32 %s193, 1
      %p197 = scmp.eq.s32.totalorder %s22, 3
      %p198 = scmp.ne.s32.totalorder %s193, %s195
      %p199 = scmp.eq.s32.totalorder %s22, 0
      %p200 = por %p198, %p199
      %p201 = scmp.ne.s32.totalorder %s193, %s195
      %p202 = scmp.eq.s32.totalorder %s27, 3
      %p203 = por %p201, %p202
      %p204 = scmp.ne.s32.totalorder %s195, %s196
      %p205 = scmp.eq.s32.totalorder %s27, 0
      %p206 = por %p204, %p205
      %p207 = scmp.ne.s32.totalorder %s195, %s196
      %p208 = scmp.eq.s32.totalorder %s28, 3
      %p209 = por %p207, %p208
      %p211 = scmp.ne.s32.totalorder %s196, %s210
      %p212 = scmp.eq.s32.totalorder %s28, 0
      %p213 = por %p211, %p212
      %s214 = ssub.s32 %s29, %s41
      %p215 = scmp.eq.s32.totalorder %s214, 0
      %s217 = sadd.s32 %s216, 1
      %s218 = scalar_select %p215, %s216, %s217
      %p221 = pneg %p215
      %p222 = scmp.eq.s32.totalorder %s22, 3
      %p223 = por %p221, %p222
      %p224 = scmp.ne.s32.totalorder %s216, %s219
      %p225 = scmp.eq.s32.totalorder %s22, 0
      %p226 = por %p224, %p225
      %p227 = scmp.ne.s32.totalorder %s216, %s219
      %p228 = scmp.eq.s32.totalorder %s27, 3
      %p229 = por %p227, %p228
      %p230 = scmp.ne.s32.totalorder %s219, %s220
      %p231 = scmp.eq.s32.totalorder %s27, 0
      %p232 = por %p230, %p231
      %p233 = scmp.ne.s32.totalorder %s219, %s220
      %p234 = scmp.eq.s32.totalorder %s28, 3
      %p235 = por %p233, %p234
      %p237 = scmp.ne.s32.totalorder %s220, %s236
      %p238 = scmp.eq.s32.totalorder %s28, 0
      %p239 = por %p237, %p238
      %p240 = scmp.le.s32.totalorder 1, %s22
      %p241 = scmp.lt.s32.totalorder %s22, 5
      %p242 = pnand %p240, %p241
      %p243 = pneg %p242
      // Predicated region
      $region9: #{_decoder_stack_call.1} parent=5 // pred_check
        _
      $region10: #{_decoder_stack_call.1} parent=5 // pred_check_branch
        %245 = sbr.rel (%p242) target = $region12
      $region11: #{_decoder_stack_call.1} parent=5 // pred_region
        %s246 = ssub.s32 %s22, 1
        // Predicated region
        $region13: #{_decoder_stack_call.1} parent=11 // pred_check
          %p247 = pneg %p185
        $region14: #{_decoder_stack_call.1} parent=11 // pred_check_branch
          %249 = sbr.rel (%p247) target = $region16
        $region15: #{_decoder_stack_call.1} parent=11 // pred_region
          _
        $region16: #{_decoder_stack_call.1} parent=11 // pred_fallthru
          _
        // Predicated region
        $region17: #{_decoder_stack_call.1} parent=11 // pred_check
          %p250 = pneg %p206
        $region18: #{_decoder_stack_call.1} parent=11 // pred_check_branch
          %252 = sbr.rel (%p250) target = $region20
        $region19: #{_decoder_stack_call.1} parent=11 // pred_region
          _
        $region20: #{_decoder_stack_call.1} parent=11 // pred_fallthru
          _
      $region12: #{_decoder_stack_call.1} parent=5 // pred_fallthru
        _
      %p253 = scmp.lt.s32.totalorder %s22, 4
      // Predicated region
      $region21: #{_decoder_stack_call.1} parent=5 // pred_check
        %p254 = pneg %p253
      $region22: #{_decoder_stack_call.1} parent=5 // pred_check_branch
        %256 = sbr.rel (%p254) target = $region24
      $region23: #{_decoder_stack_call.1} parent=5 // pred_region
        // Predicated region
        $region25: #{_decoder_stack_call.1} parent=23 // pred_check
          %p257 = pneg %p54
        $region26: #{_decoder_stack_call.1} parent=23 // pred_check_branch
          %259 = sbr.rel (%p257) target = $region28
        $region27: #{_decoder_stack_call.1} parent=23 // pred_region
          %s260 = sand.u32 %s44, 1
          %s261 = scalar_lea.sflag [#allocation4], %s260
          %s262 = sand.u32 %s44, 1
          %s263 = smul.addr %s262, 256
          %s264 = scalar_lea.vmem [#allocation3], %s263
          %s265 = smul.u32 32, %s29
          %s267 = ssub.s32 4096, 4096
          %268 = vsyncadd %s261, %s267
          %s269 = smul.addr %s265, 128
          %s270 = scalar_lea.hbm %s0, %s269
          %s271 = sshll.u32 %s264, 4
          %s272 = int_to_ptr.vmem [resolvable:$true] %s271
          %277 = dma.hbm_to_vmem [thread:$0]  %s270, 4096, %s272, %s261, 128, 128, 8
        $region28: #{_decoder_stack_call.1} parent=23 // pred_fallthru
          _
        // Predicated region
        $region29: #{_decoder_stack_call.1} parent=23 // pred_check
          %p278 = pneg %p80
        $region30: #{_decoder_stack_call.1} parent=23 // pred_check_branch
          %280 = sbr.rel (%p278) target = $region32
        $region31: #{_decoder_stack_call.1} parent=23 // pred_region
          %p281 = scmp.lt.s32.totalorder %s30, 1
          %s282 = scalar_select %p281, %s30, 1
          %s283 = scalar_lea.vmem %s1, %s282
        $region32: #{_decoder_stack_call.1} parent=23 // pred_fallthru
          _
        // Predicated region
        $region33: #{_decoder_stack_call.1} parent=23 // pred_check
          %p284 = pneg %p106
        $region34: #{_decoder_stack_call.1} parent=23 // pred_check_branch
          %286 = sbr.rel (%p284) target = $region36
        $region35: #{_decoder_stack_call.1} parent=23 // pred_region
          %p287 = scmp.lt.s32.totalorder %s30, 1
          %s288 = scalar_select %p287, %s30, 1
          %s289 = scalar_lea.vmem %s2, %s288
        $region36: #{_decoder_stack_call.1} parent=23 // pred_fallthru
          _
        // Predicated region
        $region37: #{_decoder_stack_call.1} parent=23 // pred_check
          %p290 = pneg %p132
        $region38: #{_decoder_stack_call.1} parent=23 // pred_check_branch
          %292 = sbr.rel (%p290) target = $region40
        $region39: #{_decoder_stack_call.1} parent=23 // pred_region
          %s293 = sand.u32 %s122, 1
          %s294 = scalar_lea.sflag [#allocation7], %s293
          %s295 = sand.u32 %s122, 1
          %s296 = smul.addr %s295, 64
          %s297 = scalar_lea.vmem [#allocation6], %s296
          %s299 = ssub.s32 1024, 1024
          %300 = vsyncadd %s294, %s299
          %s301 = smul.addr %s30, 16
          %s302 = smul.addr %s301, 64
          %s303 = scalar_lea.hbm %s3, %s302
          %s304 = sshll.u32 %s297, 4
          %s305 = int_to_ptr.vmem [resolvable:$true] %s304
          %310 = dma.hbm_to_vmem [thread:$0]  %s303, 1024, %s305, %s294, 64, 64, 4
        $region40: #{_decoder_stack_call.1} parent=23 // pred_fallthru
          _
        // Predicated region
        $region41: #{_decoder_stack_call.1} parent=23 // pred_check
          %p311 = pneg %p158
        $region42: #{_decoder_stack_call.1} parent=23 // pred_check_branch
          %313 = sbr.rel (%p311) target = $region44
        $region43: #{_decoder_stack_call.1} parent=23 // pred_region
          %p314 = scmp.lt.s32.totalorder %s30, 1
          %s315 = scalar_select %p314, %s30, 1
          %s316 = scalar_lea.vmem %s4, %s315
        $region44: #{_decoder_stack_call.1} parent=23 // pred_fallthru
          _
      $region24: #{_decoder_stack_call.1} parent=5 // pred_fallthru
        _
      %p317 = scmp.le.s32.totalorder 1, %s22
      %p318 = scmp.lt.s32.totalorder %s22, 5
      %p319 = pnand %p317, %p318
      %p320 = pneg %p319
      // Predicated region
      $region45: #{_decoder_stack_call.1} parent=5 // pred_check
        _
      $region46: #{_decoder_stack_call.1} parent=5 // pred_check_branch
        %322 = sbr.rel (%p319) target = $region48
      $region47: #{_decoder_stack_call.1} parent=5 // pred_region
        %s323 = ssub.s32 %s22, 1
        %s324 = sand.u32 %s47, 1
        %s325 = scalar_lea.sflag [#allocation4], %s324
        %s326 = sand.u32 %s47, 1
        %s327 = smul.addr %s326, 256
        %s328 = scalar_lea.vmem [#allocation3], %s327
        // Predicated region
        $region49: #{_decoder_stack_call.1} parent=47 // pred_check
          %p329 = pneg %p60
        $region50: #{_decoder_stack_call.1} parent=47 // pred_check_branch
          %331 = sbr.rel (%p329) target = $region52
        $region51: #{_decoder_stack_call.1} parent=47 // pred_region
          %332 = dma.done %s325, 4096
        $region52: #{_decoder_stack_call.1} parent=47 // pred_fallthru
          _
        %s333 = sand.u32 %s125, 1
        %s334 = scalar_lea.sflag [#allocation7], %s333
        %s335 = sand.u32 %s125, 1
        %s336 = smul.addr %s335, 64
        %s337 = scalar_lea.vmem [#allocation6], %s336
        // Predicated region
        $region53: #{_decoder_stack_call.1} parent=47 // pred_check
          %p338 = pneg %p138
        $region54: #{_decoder_stack_call.1} parent=47 // pred_check_branch
          %340 = sbr.rel (%p338) target = $region56
        $region55: #{_decoder_stack_call.1} parent=47 // pred_region
          %341 = dma.done %s334, 1024
        $region56: #{_decoder_stack_call.1} parent=47 // pred_fallthru
          _
        %s342 = sand.u32 %s47, 1
        %s343 = scalar_lea.sflag [#allocation4], %s342
        %s344 = sand.u32 %s47, 1
        %s345 = smul.addr %s344, 256
        %s346 = scalar_lea.vmem [#allocation3], %s345
        %p347 = pneg %p60
        %p348 = pneg %p57
        %p349 = scmp.lt.s32.totalorder %s32, 1
        %s350 = scalar_select %p349, %s32, 1
        %s351 = scalar_lea.vmem %s1, %s350
        %p352 = pneg %p86
        %p353 = pneg %p83
        %p354 = scmp.lt.s32.totalorder %s32, 1
        %s355 = scalar_select %p354, %s32, 1
        %s356 = scalar_lea.vmem %s2, %s355
        %p357 = pneg %p112
        %p358 = pneg %p109
        %s359 = sand.u32 %s125, 1
        %s360 = scalar_lea.sflag [#allocation7], %s359
        %s361 = sand.u32 %s125, 1
        %s362 = smul.addr %s361, 64
        %s363 = scalar_lea.vmem [#allocation6], %s362
        %p364 = pneg %p138
        %p365 = pneg %p135
        %p366 = scmp.lt.s32.totalorder %s32, 1
        %s367 = scalar_select %p366, %s32, 1
        %s368 = scalar_lea.vmem %s4, %s367
        %p369 = pneg %p164
        %p370 = pneg %p161
        %p371 = pneg %p185
        %p372 = pneg %p182
        %p373 = pneg %p206
        %p374 = pneg %p203
        %p375 = pneg %p232
        %p376 = pneg %p229
        %s377 = sand.u32 %s219, 1
        %s378 = scalar_lea.sflag [#allocation5], %s377
        %s379 = sand.u32 %s219, 1
        %s380 = smul.addr %s379, 256
        %s381 = scalar_lea.vmem [#allocation8], %s380
        %s382 = smul.u32 32, %s31
        %p383 = scmp.lt.s32.totalorder %s32, 1
        %s384 = scalar_select %p383, %s32, 1
        %s385 = scalar_lea.vmem %s1, %s384
        %p386 = scmp.lt.s32.totalorder %s32, 1
        %s387 = scalar_select %p386, %s32, 1
        %s388 = scalar_lea.vmem %s2, %s387
        %p389 = scmp.lt.s32.totalorder %s32, 1
        %s390 = scalar_select %p389, %s32, 1
        %s391 = scalar_lea.vmem %s4, %s390
        %s392 = smul.u32 32, %s31
        %p394 = scmp.eq.s32.totalorder %s32, 0
        // Predicated region
        $region57: #{_decoder_stack_call.1} parent=47 // pred_check
          %p395 = pneg %p394
        $region58: #{_decoder_stack_call.1} parent=47 // pred_check_branch
          %397 = sbr.rel (%p395) target = $region60
        $region59: #{_decoder_stack_call.1} parent=47 // pred_region
          %v398 = vld [vmem:[%s328] sm:$0xff]
          %v399 = vld [vmem:[%s328 + $0x8] sm:$0xff]
          %v400 = vld [vmem:[%s328 + $0x10] sm:$0xff]
          %v401 = vld [vmem:[%s328 + $0x18] sm:$0xff]
          %v402 = vld [vmem:[%s328 + $0x20] sm:$0xff]
          %v403 = vld [vmem:[%s328 + $0x28] sm:$0xff]
          %v404 = vld [vmem:[%s328 + $0x30] sm:$0xff]
          %v405 = vld [vmem:[%s328 + $0x38] sm:$0xff]
          %v406 = vld [vmem:[%s328 + $0x40] sm:$0xff]
          %v407 = vld [vmem:[%s328 + $0x48] sm:$0xff]
          %v408 = vld [vmem:[%s328 + $0x50] sm:$0xff]
          %v409 = vld [vmem:[%s328 + $0x58] sm:$0xff]
          %v410 = vld [vmem:[%s328 + $0x60] sm:$0xff]
          %v411 = vld [vmem:[%s328 + $0x68] sm:$0xff]
          %v412 = vld [vmem:[%s328 + $0x70] sm:$0xff]
          %v413 = vld [vmem:[%s328 + $0x78] sm:$0xff]
          %v414 = vld [vmem:[%s328 + $0x80] sm:$0xff]
          %v415 = vld [vmem:[%s328 + $0x88] sm:$0xff]
          %v416 = vld [vmem:[%s328 + $0x90] sm:$0xff]
          %v417 = vld [vmem:[%s328 + $0x98] sm:$0xff]
          %v418 = vld [vmem:[%s328 + $0xa0] sm:$0xff]
          %v419 = vld [vmem:[%s328 + $0xa8] sm:$0xff]
          %v420 = vld [vmem:[%s328 + $0xb0] sm:$0xff]
          %v421 = vld [vmem:[%s328 + $0xb8] sm:$0xff]
          %v422 = vld [vmem:[%s328 + $0xc0] sm:$0xff]
          %v423 = vld [vmem:[%s328 + $0xc8] sm:$0xff]
          %v424 = vld [vmem:[%s328 + $0xd0] sm:$0xff]
          %v425 = vld [vmem:[%s328 + $0xd8] sm:$0xff]
          %v426 = vld [vmem:[%s328 + $0xe0] sm:$0xff]
          %v427 = vld [vmem:[%s328 + $0xe8] sm:$0xff]
          %v428 = vld [vmem:[%s328 + $0xf0] sm:$0xff]
          %v429 = vld [vmem:[%s328 + $0xf8] sm:$0xff]
          %430 = vst [vmem:[#allocation2] sm:$0xff] %v398
          %431 = vst [vmem:[#allocation2 + $0x8] sm:$0xff] %v399
          %432 = vst [vmem:[#allocation2 + $0x10] sm:$0xff] %v400
          %433 = vst [vmem:[#allocation2 + $0x18] sm:$0xff] %v401
          %434 = vst [vmem:[#allocation2 + $0x20] sm:$0xff] %v402
          %435 = vst [vmem:[#allocation2 + $0x28] sm:$0xff] %v403
          %436 = vst [vmem:[#allocation2 + $0x30] sm:$0xff] %v404
          %437 = vst [vmem:[#allocation2 + $0x38] sm:$0xff] %v405
          %438 = vst [vmem:[#allocation2 + $0x40] sm:$0xff] %v406
          %439 = vst [vmem:[#allocation2 + $0x48] sm:$0xff] %v407
          %440 = vst [vmem:[#allocation2 + $0x50] sm:$0xff] %v408
          %441 = vst [vmem:[#allocation2 + $0x58] sm:$0xff] %v409
          %442 = vst [vmem:[#allocation2 + $0x60] sm:$0xff] %v410
          %443 = vst [vmem:[#allocation2 + $0x68] sm:$0xff] %v411
          %444 = vst [vmem:[#allocation2 + $0x70] sm:$0xff] %v412
          %445 = vst [vmem:[#allocation2 + $0x78] sm:$0xff] %v413
          %446 = vst [vmem:[#allocation2 + $0x80] sm:$0xff] %v414
          %447 = vst [vmem:[#allocation2 + $0x88] sm:$0xff] %v415
          %448 = vst [vmem:[#allocation2 + $0x90] sm:$0xff] %v416
          %449 = vst [vmem:[#allocation2 + $0x98] sm:$0xff] %v417
          %450 = vst [vmem:[#allocation2 + $0xa0] sm:$0xff] %v418
          %451 = vst [vmem:[#allocation2 + $0xa8] sm:$0xff] %v419
          %452 = vst [vmem:[#allocation2 + $0xb0] sm:$0xff] %v420
          %453 = vst [vmem:[#allocation2 + $0xb8] sm:$0xff] %v421
          %454 = vst [vmem:[#allocation2 + $0xc0] sm:$0xff] %v422
          %455 = vst [vmem:[#allocation2 + $0xc8] sm:$0xff] %v423
          %456 = vst [vmem:[#allocation2 + $0xd0] sm:$0xff] %v424
          %457 = vst [vmem:[#allocation2 + $0xd8] sm:$0xff] %v425
          %458 = vst [vmem:[#allocation2 + $0xe0] sm:$0xff] %v426
          %459 = vst [vmem:[#allocation2 + $0xe8] sm:$0xff] %v427
          %460 = vst [vmem:[#allocation2 + $0xf0] sm:$0xff] %v428
          %461 = vst [vmem:[#allocation2 + $0xf8] sm:$0xff] %v429
        $region60: #{_decoder_stack_call.1} parent=47 // pred_fallthru
          _
        %v462 = vld [vmem:[#allocation2] sm:$0xff]
        %v463 = vld [vmem:[#allocation2 + $0x8] sm:$0xff]
        %v464 = vld [vmem:[#allocation2 + $0x10] sm:$0xff]
        %v465 = vld [vmem:[#allocation2 + $0x18] sm:$0xff]
        %v466 = vld [vmem:[#allocation2 + $0x20] sm:$0xff]
        %v467 = vld [vmem:[#allocation2 + $0x28] sm:$0xff]
        %v468 = vld [vmem:[#allocation2 + $0x30] sm:$0xff]
        %v469 = vld [vmem:[#allocation2 + $0x38] sm:$0xff]
        %v470 = vld [vmem:[#allocation2 + $0x40] sm:$0xff]
        %v471 = vld [vmem:[#allocation2 + $0x48] sm:$0xff]
        %v472 = vld [vmem:[#allocation2 + $0x50] sm:$0xff]
        %v473 = vld [vmem:[#allocation2 + $0x58] sm:$0xff]
        %v474 = vld [vmem:[#allocation2 + $0x60] sm:$0xff]
        %v475 = vld [vmem:[#allocation2 + $0x68] sm:$0xff]
        %v476 = vld [vmem:[#allocation2 + $0x70] sm:$0xff]
        %v477 = vld [vmem:[#allocation2 + $0x78] sm:$0xff]
        %v478 = vld [vmem:[#allocation2 + $0x80] sm:$0xff]
        %v479 = vld [vmem:[#allocation2 + $0x88] sm:$0xff]
        %v480 = vld [vmem:[#allocation2 + $0x90] sm:$0xff]
        %v481 = vld [vmem:[#allocation2 + $0x98] sm:$0xff]
        %v482 = vld [vmem:[#allocation2 + $0xa0] sm:$0xff]
        %v483 = vld [vmem:[#allocation2 + $0xa8] sm:$0xff]
        %v484 = vld [vmem:[#allocation2 + $0xb0] sm:$0xff]
        %v485 = vld [vmem:[#allocation2 + $0xb8] sm:$0xff]
        %v486 = vld [vmem:[#allocation2 + $0xc0] sm:$0xff]
        %v487 = vld [vmem:[#allocation2 + $0xc8] sm:$0xff]
        %v488 = vld [vmem:[#allocation2 + $0xd0] sm:$0xff]
        %v489 = vld [vmem:[#allocation2 + $0xd8] sm:$0xff]
        %v490 = vld [vmem:[#allocation2 + $0xe0] sm:$0xff]
        %v491 = vld [vmem:[#allocation2 + $0xe8] sm:$0xff]
        %v492 = vld [vmem:[#allocation2 + $0xf0] sm:$0xff]
        %v493 = vld [vmem:[#allocation2 + $0xf8] sm:$0xff]
        %v494 = vld [vmem:[%s385] sm:$0x1]
        %v495 = vld [vmem:[%s388] sm:$0x1]
        %496 = vadd.xlane.f32.xlu0 %v462
        %v497 = vpop.xlane.xlu0 %496
        %498 = vadd.xlane.f32.xlu0 %v463
        %v499 = vpop.xlane.xlu0 %498
        %500 = vadd.xlane.f32.xlu0 %v464
        %v501 = vpop.xlane.xlu0 %500
        %502 = vadd.xlane.f32.xlu0 %v465
        %v503 = vpop.xlane.xlu0 %502
        %504 = vadd.xlane.f32.xlu0 %v466
        %v505 = vpop.xlane.xlu0 %504
        %506 = vadd.xlane.f32.xlu0 %v467
        %v507 = vpop.xlane.xlu0 %506
        %508 = vadd.xlane.f32.xlu0 %v468
        %v509 = vpop.xlane.xlu0 %508
        %510 = vadd.xlane.f32.xlu0 %v469
        %v511 = vpop.xlane.xlu0 %510
        %512 = vadd.xlane.f32.xlu0 %v470
        %v513 = vpop.xlane.xlu0 %512
        %514 = vadd.xlane.f32.xlu0 %v471
        %v515 = vpop.xlane.xlu0 %514
        %516 = vadd.xlane.f32.xlu0 %v472
        %v517 = vpop.xlane.xlu0 %516
        %518 = vadd.xlane.f32.xlu0 %v473
        %v519 = vpop.xlane.xlu0 %518
        %520 = vadd.xlane.f32.xlu0 %v474
        %v521 = vpop.xlane.xlu0 %520
        %522 = vadd.xlane.f32.xlu0 %v475
        %v523 = vpop.xlane.xlu0 %522
        %524 = vadd.xlane.f32.xlu0 %v476
        %v525 = vpop.xlane.xlu0 %524
        %526 = vadd.xlane.f32.xlu0 %v477
        %v527 = vpop.xlane.xlu0 %526
        %528 = vadd.xlane.f32.xlu0 %v478
        %v529 = vpop.xlane.xlu0 %528
        %530 = vadd.xlane.f32.xlu0 %v479
        %v531 = vpop.xlane.xlu0 %530
        %532 = vadd.xlane.f32.xlu0 %v480
        %v533 = vpop.xlane.xlu0 %532
        %534 = vadd.xlane.f32.xlu0 %v481
        %v535 = vpop.xlane.xlu0 %534
        %536 = vadd.xlane.f32.xlu0 %v482
        %v537 = vpop.xlane.xlu0 %536
        %538 = vadd.xlane.f32.xlu0 %v483
        %v539 = vpop.xlane.xlu0 %538
        %540 = vadd.xlane.f32.xlu0 %v484
        %v541 = vpop.xlane.xlu0 %540
        %542 = vadd.xlane.f32.xlu0 %v485
        %v543 = vpop.xlane.xlu0 %542
        %544 = vadd.xlane.f32.xlu0 %v486
        %v545 = vpop.xlane.xlu0 %544
        %546 = vadd.xlane.f32.xlu0 %v487
        %v547 = vpop.xlane.xlu0 %546
        %548 = vadd.xlane.f32.xlu0 %v488
        %v549 = vpop.xlane.xlu0 %548
        %550 = vadd.xlane.f32.xlu0 %v489
        %v551 = vpop.xlane.xlu0 %550
        %552 = vadd.xlane.f32.xlu0 %v490
        %v553 = vpop.xlane.xlu0 %552
        %554 = vadd.xlane.f32.xlu0 %v491
        %v555 = vpop.xlane.xlu0 %554
        %556 = vadd.xlane.f32.xlu0 %v492
        %v557 = vpop.xlane.xlu0 %556
        %558 = vadd.xlane.f32.xlu0 %v493
        %v559 = vpop.xlane.xlu0 %558
        %v560 = vrcp.pop 128.0
        %v561 = vmul.f32 %v497, %v560
        %v562 = vmul.f32 %v499, %v560
        %v563 = vmul.f32 %v501, %v560
        %v564 = vmul.f32 %v503, %v560
        %v565 = vmul.f32 %v505, %v560
        %v566 = vmul.f32 %v507, %v560
        %v567 = vmul.f32 %v509, %v560
        %v568 = vmul.f32 %v511, %v560
        %v569 = vmul.f32 %v513, %v560
        %v570 = vmul.f32 %v515, %v560
        %v571 = vmul.f32 %v517, %v560
        %v572 = vmul.f32 %v519, %v560
        %v573 = vmul.f32 %v521, %v560
        %v574 = vmul.f32 %v523, %v560
        %v575 = vmul.f32 %v525, %v560
        %v576 = vmul.f32 %v527, %v560
        %v577 = vmul.f32 %v529, %v560
        %v578 = vmul.f32 %v531, %v560
        %v579 = vmul.f32 %v533, %v560
        %v580 = vmul.f32 %v535, %v560
        %v581 = vmul.f32 %v537, %v560
        %v582 = vmul.f32 %v539, %v560
        %v583 = vmul.f32 %v541, %v560
        %v584 = vmul.f32 %v543, %v560
        %v585 = vmul.f32 %v545, %v560
        %v586 = vmul.f32 %v547, %v560
        %v587 = vmul.f32 %v549, %v560
        %v588 = vmul.f32 %v551, %v560
        %v589 = vmul.f32 %v553, %v560
        %v590 = vmul.f32 %v555, %v560
        %v591 = vmul.f32 %v557, %v560
        %v592 = vmul.f32 %v559, %v560
        %v593 = vsub.f32 %v462, %v561
        %v594 = vsub.f32 %v463, %v562
        %v595 = vsub.f32 %v464, %v563
        %v596 = vsub.f32 %v465, %v564
        %v597 = vsub.f32 %v466, %v565
        %v598 = vsub.f32 %v467, %v566
        %v599 = vsub.f32 %v468, %v567
        %v600 = vsub.f32 %v469, %v568
        %v601 = vsub.f32 %v470, %v569
        %v602 = vsub.f32 %v471, %v570
        %v603 = vsub.f32 %v472, %v571
        %v604 = vsub.f32 %v473, %v572
        %v605 = vsub.f32 %v474, %v573
        %v606 = vsub.f32 %v475, %v574
        %v607 = vsub.f32 %v476, %v575
        %v608 = vsub.f32 %v477, %v576
        %v609 = vsub.f32 %v478, %v577
        %v610 = vsub.f32 %v479, %v578
        %v611 = vsub.f32 %v480, %v579
        %v612 = vsub.f32 %v481, %v580
        %v613 = vsub.f32 %v482, %v581
        %v614 = vsub.f32 %v483, %v582
        %v615 = vsub.f32 %v484, %v583
        %v616 = vsub.f32 %v485, %v584
        %v617 = vsub.f32 %v486, %v585
        %v618 = vsub.f32 %v487, %v586
        %v619 = vsub.f32 %v488, %v587
        %v620 = vsub.f32 %v489, %v588
        %v621 = vsub.f32 %v490, %v589
        %v622 = vsub.f32 %v491, %v590
        %v623 = vsub.f32 %v492, %v591
        %v624 = vsub.f32 %v493, %v592
        %v625 = vmul.f32 %v593, %v593
        %v626 = vmul.f32 %v594, %v594
        %v627 = vmul.f32 %v595, %v595
        %v628 = vmul.f32 %v596, %v596
        %v629 = vmul.f32 %v597, %v597
        %v630 = vmul.f32 %v598, %v598
        %v631 = vmul.f32 %v599, %v599
        %v632 = vmul.f32 %v600, %v600
        %v633 = vmul.f32 %v601, %v601
        %v634 = vmul.f32 %v602, %v602
        %v635 = vmul.f32 %v603, %v603
        %v636 = vmul.f32 %v604, %v604
        %v637 = vmul.f32 %v605, %v605
        %v638 = vmul.f32 %v606, %v606
        %v639 = vmul.f32 %v607, %v607
        %v640 = vmul.f32 %v608, %v608
        %v641 = vmul.f32 %v609, %v609
        %v642 = vmul.f32 %v610, %v610
        %v643 = vmul.f32 %v611, %v611
        %v644 = vmul.f32 %v612, %v612
        %v645 = vmul.f32 %v613, %v613
        %v646 = vmul.f32 %v614, %v614
        %v647 = vmul.f32 %v615, %v615
        %v648 = vmul.f32 %v616, %v616
        %v649 = vmul.f32 %v617, %v617
        %v650 = vmul.f32 %v618, %v618
        %v651 = vmul.f32 %v619, %v619
        %v652 = vmul.f32 %v620, %v620
        %v653 = vmul.f32 %v621, %v621
        %v654 = vmul.f32 %v622, %v622
        %v655 = vmul.f32 %v623, %v623
        %v656 = vmul.f32 %v624, %v624
        %657 = vadd.xlane.f32.xlu0 %v625
        %v658 = vpop.xlane.xlu0 %657
        %659 = vadd.xlane.f32.xlu0 %v626
        %v660 = vpop.xlane.xlu0 %659
        %661 = vadd.xlane.f32.xlu0 %v627
        %v662 = vpop.xlane.xlu0 %661
        %663 = vadd.xlane.f32.xlu0 %v628
        %v664 = vpop.xlane.xlu0 %663
        %665 = vadd.xlane.f32.xlu0 %v629
        %v666 = vpop.xlane.xlu0 %665
        %667 = vadd.xlane.f32.xlu0 %v630
        %v668 = vpop.xlane.xlu0 %667
        %669 = vadd.xlane.f32.xlu0 %v631
        %v670 = vpop.xlane.xlu0 %669
        %671 = vadd.xlane.f32.xlu0 %v632
        %v672 = vpop.xlane.xlu0 %671
        %673 = vadd.xlane.f32.xlu0 %v633
        %v674 = vpop.xlane.xlu0 %673
        %675 = vadd.xlane.f32.xlu0 %v634
        %v676 = vpop.xlane.xlu0 %675
        %677 = vadd.xlane.f32.xlu0 %v635
        %v678 = vpop.xlane.xlu0 %677
        %679 = vadd.xlane.f32.xlu0 %v636
        %v680 = vpop.xlane.xlu0 %679
        %681 = vadd.xlane.f32.xlu0 %v637
        %v682 = vpop.xlane.xlu0 %681
        %683 = vadd.xlane.f32.xlu0 %v638
        %v684 = vpop.xlane.xlu0 %683
        %685 = vadd.xlane.f32.xlu0 %v639
        %v686 = vpop.xlane.xlu0 %685
        %687 = vadd.xlane.f32.xlu0 %v640
        %v688 = vpop.xlane.xlu0 %687
        %689 = vadd.xlane.f32.xlu0 %v641
        %v690 = vpop.xlane.xlu0 %689
        %691 = vadd.xlane.f32.xlu0 %v642
        %v692 = vpop.xlane.xlu0 %691
        %693 = vadd.xlane.f32.xlu0 %v643
        %v694 = vpop.xlane.xlu0 %693
        %695 = vadd.xlane.f32.xlu0 %v644
        %v696 = vpop.xlane.xlu0 %695
        %697 = vadd.xlane.f32.xlu0 %v645
        %v698 = vpop.xlane.xlu0 %697
        %699 = vadd.xlane.f32.xlu0 %v646
        %v700 = vpop.xlane.xlu0 %699
        %701 = vadd.xlane.f32.xlu0 %v647
        %v702 = vpop.xlane.xlu0 %701
        %703 = vadd.xlane.f32.xlu0 %v648
        %v704 = vpop.xlane.xlu0 %703
        %705 = vadd.xlane.f32.xlu0 %v649
        %v706 = vpop.xlane.xlu0 %705
        %707 = vadd.xlane.f32.xlu0 %v650
        %v708 = vpop.xlane.xlu0 %707
        %709 = vadd.xlane.f32.xlu0 %v651
        %v710 = vpop.xlane.xlu0 %709
        %711 = vadd.xlane.f32.xlu0 %v652
        %v712 = vpop.xlane.xlu0 %711
        %713 = vadd.xlane.f32.xlu0 %v653
        %v714 = vpop.xlane.xlu0 %713
        %715 = vadd.xlane.f32.xlu0 %v654
        %v716 = vpop.xlane.xlu0 %715
        %717 = vadd.xlane.f32.xlu0 %v655
        %v718 = vpop.xlane.xlu0 %717
        %719 = vadd.xlane.f32.xlu0 %v656
        %v720 = vpop.xlane.xlu0 %719
        %v721 = vmul.f32 %v658, %v560
        %v722 = vmul.f32 %v660, %v560
        %v723 = vmul.f32 %v662, %v560
        %v724 = vmul.f32 %v664, %v560
        %v725 = vmul.f32 %v666, %v560
        %v726 = vmul.f32 %v668, %v560
        %v727 = vmul.f32 %v670, %v560
        %v728 = vmul.f32 %v672, %v560
        %v729 = vmul.f32 %v674, %v560
        %v730 = vmul.f32 %v676, %v560
        %v731 = vmul.f32 %v678, %v560
        %v732 = vmul.f32 %v680, %v560
        %v733 = vmul.f32 %v682, %v560
        %v734 = vmul.f32 %v684, %v560
        %v735 = vmul.f32 %v686, %v560
        %v736 = vmul.f32 %v688, %v560
        %v737 = vmul.f32 %v690, %v560
        %v738 = vmul.f32 %v692, %v560
        %v739 = vmul.f32 %v694, %v560
        %v740 = vmul.f32 %v696, %v560
        %v741 = vmul.f32 %v698, %v560
        %v742 = vmul.f32 %v700, %v560
        %v743 = vmul.f32 %v702, %v560
        %v744 = vmul.f32 %v704, %v560
        %v745 = vmul.f32 %v706, %v560
        %v746 = vmul.f32 %v708, %v560
        %v747 = vmul.f32 %v710, %v560
        %v748 = vmul.f32 %v712, %v560
        %v749 = vmul.f32 %v714, %v560
        %v750 = vmul.f32 %v716, %v560
        %v751 = vmul.f32 %v718, %v560
        %v752 = vmul.f32 %v720, %v560
        %v753 = vadd.f32 %v721, 1e-05
        %v754 = vadd.f32 %v722, 1e-05
        %v755 = vadd.f32 %v723, 1e-05
        %v756 = vadd.f32 %v724, 1e-05
        %v757 = vadd.f32 %v725, 1e-05
        %v758 = vadd.f32 %v726, 1e-05
        %v759 = vadd.f32 %v727, 1e-05
        %v760 = vadd.f32 %v728, 1e-05
        %v761 = vadd.f32 %v729, 1e-05
        %v762 = vadd.f32 %v730, 1e-05
        %v763 = vadd.f32 %v731, 1e-05
        %v764 = vadd.f32 %v732, 1e-05
        %v765 = vadd.f32 %v733, 1e-05
        %v766 = vadd.f32 %v734, 1e-05
        %v767 = vadd.f32 %v735, 1e-05
        %v768 = vadd.f32 %v736, 1e-05
        %v769 = vadd.f32 %v737, 1e-05
        %v770 = vadd.f32 %v738, 1e-05
        %v771 = vadd.f32 %v739, 1e-05
        %v772 = vadd.f32 %v740, 1e-05
        %v773 = vadd.f32 %v741, 1e-05
        %v774 = vadd.f32 %v742, 1e-05
        %v775 = vadd.f32 %v743, 1e-05
        %v776 = vadd.f32 %v744, 1e-05
        %v777 = vadd.f32 %v745, 1e-05
        %v778 = vadd.f32 %v746, 1e-05
        %v779 = vadd.f32 %v747, 1e-05
        %v780 = vadd.f32 %v748, 1e-05
        %v781 = vadd.f32 %v749, 1e-05
        %v782 = vadd.f32 %v750, 1e-05
        %v783 = vadd.f32 %v751, 1e-05
        %v784 = vadd.f32 %v752, 1e-05
        %v785 = vrsqrt.pop %v753
        %v786 = vrsqrt.pop %v754
        %v787 = vrsqrt.pop %v755
        %v788 = vrsqrt.pop %v756
        %v789 = vrsqrt.pop %v757
        %v790 = vrsqrt.pop %v758
        %v791 = vrsqrt.pop %v759
        %v792 = vrsqrt.pop %v760
        %v793 = vrsqrt.pop %v761
        %v794 = vrsqrt.pop %v762
        %v795 = vrsqrt.pop %v763
        %v796 = vrsqrt.pop %v764
        %v797 = vrsqrt.pop %v765
        %v798 = vrsqrt.pop %v766
        %v799 = vrsqrt.pop %v767
        %v800 = vrsqrt.pop %v768
        %v801 = vrsqrt.pop %v769
        %v802 = vrsqrt.pop %v770
        %v803 = vrsqrt.pop %v771
        %v804 = vrsqrt.pop %v772
        %v805 = vrsqrt.pop %v773
        %v806 = vrsqrt.pop %v774
        %v807 = vrsqrt.pop %v775
        %v808 = vrsqrt.pop %v776
        %v809 = vrsqrt.pop %v777
        %v810 = vrsqrt.pop %v778
        %v811 = vrsqrt.pop %v779
        %v812 = vrsqrt.pop %v780
        %v813 = vrsqrt.pop %v781
        %v814 = vrsqrt.pop %v782
        %v815 = vrsqrt.pop %v783
        %v816 = vrsqrt.pop %v784
        %v817 = vmul.f32 %v593, %v785
        %v818 = vmul.f32 %v594, %v786
        %v819 = vmul.f32 %v595, %v787
        %v820 = vmul.f32 %v596, %v788
        %v821 = vmul.f32 %v597, %v789
        %v822 = vmul.f32 %v598, %v790
        %v823 = vmul.f32 %v599, %v791
        %v824 = vmul.f32 %v600, %v792
        %v825 = vmul.f32 %v601, %v793
        %v826 = vmul.f32 %v602, %v794
        %v827 = vmul.f32 %v603, %v795
        %v828 = vmul.f32 %v604, %v796
        %v829 = vmul.f32 %v605, %v797
        %v830 = vmul.f32 %v606, %v798
        %v831 = vmul.f32 %v607, %v799
        %v832 = vmul.f32 %v608, %v800
        %v833 = vmul.f32 %v609, %v801
        %v834 = vmul.f32 %v610, %v802
        %v835 = vmul.f32 %v611, %v803
        %v836 = vmul.f32 %v612, %v804
        %v837 = vmul.f32 %v613, %v805
        %v838 = vmul.f32 %v614, %v806
        %v839 = vmul.f32 %v615, %v807
        %v840 = vmul.f32 %v616, %v808
        %v841 = vmul.f32 %v617, %v809
        %v842 = vmul.f32 %v618, %v810
        %v843 = vmul.f32 %v619, %v811
        %v844 = vmul.f32 %v620, %v812
        %v845 = vmul.f32 %v621, %v813
        %v846 = vmul.f32 %v622, %v814
        %v847 = vmul.f32 %v623, %v815
        %v848 = vmul.f32 %v624, %v816
        %v850 = vlaneseq
        %v851 = vshrl.u32 %v850, 7
        %v852 = vsub.s32 0, %v851
        %v853 = vrot.slane %v494, %v852
        %v855 = vmul.f32 %v817, %v853
        %v856 = vmul.f32 %v818, %v853
        %v857 = vmul.f32 %v819, %v853
        %v858 = vmul.f32 %v820, %v853
        %v859 = vmul.f32 %v821, %v853
        %v860 = vmul.f32 %v822, %v853
        %v861 = vmul.f32 %v823, %v853
        %v862 = vmul.f32 %v824, %v853
        %v863 = vmul.f32 %v825, %v853
        %v864 = vmul.f32 %v826, %v853
        %v865 = vmul.f32 %v827, %v853
        %v866 = vmul.f32 %v828, %v853
        %v867 = vmul.f32 %v829, %v853
        %v868 = vmul.f32 %v830, %v853
        %v869 = vmul.f32 %v831, %v853
        %v870 = vmul.f32 %v832, %v853
        %v871 = vmul.f32 %v833, %v853
        %v872 = vmul.f32 %v834, %v853
        %v873 = vmul.f32 %v835, %v853
        %v874 = vmul.f32 %v836, %v853
        %v875 = vmul.f32 %v837, %v853
        %v876 = vmul.f32 %v838, %v853
        %v877 = vmul.f32 %v839, %v853
        %v878 = vmul.f32 %v840, %v853
        %v879 = vmul.f32 %v841, %v853
        %v880 = vmul.f32 %v842, %v853
        %v881 = vmul.f32 %v843, %v853
        %v882 = vmul.f32 %v844, %v853
        %v883 = vmul.f32 %v845, %v853
        %v884 = vmul.f32 %v846, %v853
        %v885 = vmul.f32 %v847, %v853
        %v886 = vmul.f32 %v848, %v853
        %v888 = vlaneseq
        %v889 = vshrl.u32 %v888, 7
        %v890 = vsub.s32 0, %v889
        %v891 = vrot.slane %v495, %v890
        %v893 = vadd.f32 %v855, %v891
        %v894 = vadd.f32 %v856, %v891
        %v895 = vadd.f32 %v857, %v891
        %v896 = vadd.f32 %v858, %v891
        %v897 = vadd.f32 %v859, %v891
        %v898 = vadd.f32 %v860, %v891
        %v899 = vadd.f32 %v861, %v891
        %v900 = vadd.f32 %v862, %v891
        %v901 = vadd.f32 %v863, %v891
        %v902 = vadd.f32 %v864, %v891
        %v903 = vadd.f32 %v865, %v891
        %v904 = vadd.f32 %v866, %v891
        %v905 = vadd.f32 %v867, %v891
        %v906 = vadd.f32 %v868, %v891
        %v907 = vadd.f32 %v869, %v891
        %v908 = vadd.f32 %v870, %v891
        %v909 = vadd.f32 %v871, %v891
        %v910 = vadd.f32 %v872, %v891
        %v911 = vadd.f32 %v873, %v891
        %v912 = vadd.f32 %v874, %v891
        %v913 = vadd.f32 %v875, %v891
        %v914 = vadd.f32 %v876, %v891
        %v915 = vadd.f32 %v877, %v891
        %v916 = vadd.f32 %v878, %v891
        %v917 = vadd.f32 %v879, %v891
        %v918 = vadd.f32 %v880, %v891
        %v919 = vadd.f32 %v881, %v891
        %v920 = vadd.f32 %v882, %v891
        %v921 = vadd.f32 %v883, %v891
        %v922 = vadd.f32 %v884, %v891
        %v923 = vadd.f32 %v885, %v891
        %v924 = vadd.f32 %v886, %v891
        %v925 = vpack.c.bf16 %v894, %v893
        %v926 = vpack.c.bf16 %v896, %v895
        %v927 = vpack.c.bf16 %v898, %v897
        %v928 = vpack.c.bf16 %v900, %v899
        %v929 = vpack.c.bf16 %v902, %v901
        %v930 = vpack.c.bf16 %v904, %v903
        %v931 = vpack.c.bf16 %v906, %v905
        %v932 = vpack.c.bf16 %v908, %v907
        %v933 = vpack.c.bf16 %v910, %v909
        %v934 = vpack.c.bf16 %v912, %v911
        %v935 = vpack.c.bf16 %v914, %v913
        %v936 = vpack.c.bf16 %v916, %v915
        %v937 = vpack.c.bf16 %v918, %v917
        %v938 = vpack.c.bf16 %v920, %v919
        %v939 = vpack.c.bf16 %v922, %v921
        %v940 = vpack.c.bf16 %v924, %v923
        %v941 = vld [vmem:[%s337] sm:$0xf]
        %v942 = vld [vmem:[%s337 + $0x4] sm:$0xf]
        %v943 = vld [vmem:[%s337 + $0x8] sm:$0xf]
        %v944 = vld [vmem:[%s337 + $0xc] sm:$0xf]
        %v945 = vld [vmem:[%s337 + $0x10] sm:$0xf]
        %v946 = vld [vmem:[%s337 + $0x14] sm:$0xf]
        %v947 = vld [vmem:[%s337 + $0x18] sm:$0xf]
        %v948 = vld [vmem:[%s337 + $0x1c] sm:$0xf]
        %v949 = vld [vmem:[%s337 + $0x20] sm:$0xf]
        %v950 = vld [vmem:[%s337 + $0x24] sm:$0xf]
        %v951 = vld [vmem:[%s337 + $0x28] sm:$0xf]
        %v952 = vld [vmem:[%s337 + $0x2c] sm:$0xf]
        %v953 = vld [vmem:[%s337 + $0x30] sm:$0xf]
        %v954 = vld [vmem:[%s337 + $0x34] sm:$0xf]
        %v955 = vld [vmem:[%s337 + $0x38] sm:$0xf]
        %v956 = vld [vmem:[%s337 + $0x3c] sm:$0xf]
        %v957 = vld [vmem:[%s391] sm:$0x1]
        %v959 = vlaneseq
        %v960 = vshrl.u32 %v959, 7
        %v961 = vsub.s32 0, %v960
        %v962 = vrot.slane %v957, %v961
        %v980 = vunpack.c.l.b16 %v941
        %v981 = vunpack.c.l.b16 %v942
        %v982 = vunpack.c.l.b16 %v943
        %v983 = vunpack.c.l.b16 %v944
        %v984 = vunpack.c.l.b16 %v945
        %v985 = vunpack.c.l.b16 %v946
        %v986 = vunpack.c.l.b16 %v947
        %v987 = vunpack.c.l.b16 %v948
        %v988 = vunpack.c.l.b16 %v949
        %v989 = vunpack.c.l.b16 %v950
        %v990 = vunpack.c.l.b16 %v951
        %v991 = vunpack.c.l.b16 %v952
        %v992 = vunpack.c.l.b16 %v953
        %v993 = vunpack.c.l.b16 %v954
        %v994 = vunpack.c.l.b16 %v955
        %v995 = vunpack.c.l.b16 %v956
        %v996 = vpack.c.b16 %v981, %v980
        %v997 = vpack.c.b16 %v983, %v982
        %v998 = vpack.c.b16 %v985, %v984
        %v999 = vpack.c.b16 %v987, %v986
        %v1000 = vpack.c.b16 %v989, %v988
        %v1001 = vpack.c.b16 %v991, %v990
        %v1002 = vpack.c.b16 %v993, %v992
        %v1003 = vpack.c.b16 %v995, %v994
        %1012 = vmatprep.subr.bf16.mxu0 0
        %1013 = vmatpush1.bf16.msra.mxu0 %v996
        %1014 = vmatprep.subr.bf16.mxu0 0
        %1015 = vmatpush1.bf16.msra.mxu0 %v997
        %1016 = vmatprep.subr.bf16.mxu0 0
        %1017 = vmatpush1.bf16.msra.mxu0 %v998
        %1018 = vmatprep.subr.bf16.mxu0 0
        %1019 = vmatpush1.bf16.msra.mxu0 %v999
        %1020 = vmatprep.subr.bf16.mxu0 0
        %1021 = vmatpush1.bf16.msra.mxu0 %v1000
        %1022 = vmatprep.subr.bf16.mxu0 0
        %1023 = vmatpush1.bf16.msra.mxu0 %v1001
        %1024 = vmatprep.subr.bf16.mxu0 0
        %1025 = vmatpush1.bf16.msra.mxu0 %v1002
        %1026 = vmatprep.subr.bf16.mxu0 0
        %1027 = vmatpush1.bf16.msra.mxu0 %v1003
        %1028 = vmatprep.subr.bf16.mxu0 0
        %1029 = vmatpush1.bf16.msra.mxu0 0
        %1030 = vmatprep.subr.bf16.mxu0 0
        %1031 = vmatpush1.bf16.msra.mxu0 0
        %1032 = vmatprep.subr.bf16.mxu0 0
        %1033 = vmatpush1.bf16.msra.mxu0 0
        %1034 = vmatprep.subr.bf16.mxu0 0
        %1035 = vmatpush1.bf16.msra.mxu0 0
        %1036 = vmatprep.subr.bf16.mxu0 0
        %1037 = vmatpush1.bf16.msra.mxu0 0
        %1038 = vmatprep.subr.bf16.mxu0 0
        %1039 = vmatpush1.bf16.msra.mxu0 0
        %1040 = vmatprep.subr.bf16.mxu0 0
        %1041 = vmatpush1.bf16.msra.mxu0 0
        %1042 = vmatprep.subr.bf16.mxu0 0
        %1043 = vmatpush1.bf16.msra.mxu0 0
        %1044 = vmatprep.mubr.bf16.mxu0 0
        %1045 = vmatmul.mubr.bf16.gmra.mrb[0].mxu0 %v925
        %v1046 = vpop.f32.mrb[0].mxu0
        %v1047 = vadd.f32 %v962, %v1046
        %v1048 = vpop.f32.mrb[0].mxu0
        %v1049 = vpop.f32.mrb[0].mxu0
        %v1050 = vadd.f32 %v962, %v1049
        %v1051 = vpop.f32.mrb[0].mxu0
        %1052 = vmatprep.mubr.bf16.mxu0 0
        %1053 = vmatmul.mubr.bf16.gmra.mrb[0].mxu0 %v926
        %v1054 = vpop.f32.mrb[0].mxu0
        %v1055 = vadd.f32 %v962, %v1054
        %v1056 = vpop.f32.mrb[0].mxu0
        %v1057 = vpop.f32.mrb[0].mxu0
        %v1058 = vadd.f32 %v962, %v1057
        %v1059 = vpop.f32.mrb[0].mxu0
        %1060 = vmatprep.mubr.bf16.mxu0 0
        %1061 = vmatmul.mubr.bf16.gmra.mrb[0].mxu0 %v927
        %v1062 = vpop.f32.mrb[0].mxu0
        %v1063 = vadd.f32 %v962, %v1062
        %v1064 = vpop.f32.mrb[0].mxu0
        %v1065 = vpop.f32.mrb[0].mxu0
        %v1066 = vadd.f32 %v962, %v1065
        %v1067 = vpop.f32.mrb[0].mxu0
        %1068 = vmatprep.mubr.bf16.mxu0 0
        %1069 = vmatmul.mubr.bf16.gmra.mrb[0].mxu0 %v928
        %v1070 = vpop.f32.mrb[0].mxu0
        %v1071 = vadd.f32 %v962, %v1070
        %v1072 = vpop.f32.mrb[0].mxu0
        %v1073 = vpop.f32.mrb[0].mxu0
        %v1074 = vadd.f32 %v962, %v1073
        %v1075 = vpop.f32.mrb[0].mxu0
        %1076 = vmatprep.mubr.bf16.mxu0 0
        %1077 = vmatmul.mubr.bf16.gmra.mrb[0].mxu0 %v929
        %v1078 = vpop.f32.mrb[0].mxu0
        %v1079 = vadd.f32 %v962, %v1078
        %v1080 = vpop.f32.mrb[0].mxu0
        %v1081 = vpop.f32.mrb[0].mxu0
        %v1082 = vadd.f32 %v962, %v1081
        %v1083 = vpop.f32.mrb[0].mxu0
        %1084 = vmatprep.mubr.bf16.mxu0 0
        %1085 = vmatmul.mubr.bf16.gmra.mrb[0].mxu0 %v930
        %v1086 = vpop.f32.mrb[0].mxu0
        %v1087 = vadd.f32 %v962, %v1086
        %v1088 = vpop.f32.mrb[0].mxu0
        %v1089 = vpop.f32.mrb[0].mxu0
        %v1090 = vadd.f32 %v962, %v1089
        %v1091 = vpop.f32.mrb[0].mxu0
        %1092 = vmatprep.mubr.bf16.mxu0 0
        %1093 = vmatmul.mubr.bf16.gmra.mrb[0].mxu0 %v931
        %v1094 = vpop.f32.mrb[0].mxu0
        %v1095 = vadd.f32 %v962, %v1094
        %v1096 = vpop.f32.mrb[0].mxu0
        %v1097 = vpop.f32.mrb[0].mxu0
        %v1098 = vadd.f32 %v962, %v1097
        %v1099 = vpop.f32.mrb[0].mxu0
        %1100 = vmatprep.mubr.bf16.mxu0 0
        %1101 = vmatmul.mubr.bf16.gmra.mrb[0].mxu0 %v932
        %v1102 = vpop.f32.mrb[0].mxu0
        %v1103 = vadd.f32 %v962, %v1102
        %v1104 = vpop.f32.mrb[0].mxu0
        %v1105 = vpop.f32.mrb[0].mxu0
        %v1106 = vadd.f32 %v962, %v1105
        %v1107 = vpop.f32.mrb[0].mxu0
        %1108 = vmatprep.mubr.bf16.mxu0 0
        %1109 = vmatmul.mubr.bf16.gmra.mrb[0].mxu0 %v933
        %v1110 = vpop.f32.mrb[0].mxu0
        %v1111 = vadd.f32 %v962, %v1110
        %v1112 = vpop.f32.mrb[0].mxu0
        %v1113 = vpop.f32.mrb[0].mxu0
        %v1114 = vadd.f32 %v962, %v1113
        %v1115 = vpop.f32.mrb[0].mxu0
        %1116 = vmatprep.mubr.bf16.mxu0 0
        %1117 = vmatmul.mubr.bf16.gmra.mrb[0].mxu0 %v934
        %v1118 = vpop.f32.mrb[0].mxu0
        %v1119 = vadd.f32 %v962, %v1118
        %v1120 = vpop.f32.mrb[0].mxu0
        %v1121 = vpop.f32.mrb[0].mxu0
        %v1122 = vadd.f32 %v962, %v1121
        %v1123 = vpop.f32.mrb[0].mxu0
        %1124 = vmatprep.mubr.bf16.mxu0 0
        %1125 = vmatmul.mubr.bf16.gmra.mrb[0].mxu0 %v935
        %v1126 = vpop.f32.mrb[0].mxu0
        %v1127 = vadd.f32 %v962, %v1126
        %v1128 = vpop.f32.mrb[0].mxu0
        %v1129 = vpop.f32.mrb[0].mxu0
        %v1130 = vadd.f32 %v962, %v1129
        %v1131 = vpop.f32.mrb[0].mxu0
        %1132 = vmatprep.mubr.bf16.mxu0 0
        %1133 = vmatmul.mubr.bf16.gmra.mrb[0].mxu0 %v936
        %v1134 = vpop.f32.mrb[0].mxu0
        %v1135 = vadd.f32 %v962, %v1134
        %v1136 = vpop.f32.mrb[0].mxu0
        %v1137 = vpop.f32.mrb[0].mxu0
        %v1138 = vadd.f32 %v962, %v1137
        %v1139 = vpop.f32.mrb[0].mxu0
        %1140 = vmatprep.mubr.bf16.mxu0 0
        %1141 = vmatmul.mubr.bf16.gmra.mrb[0].mxu0 %v937
        %v1142 = vpop.f32.mrb[0].mxu0
        %v1143 = vadd.f32 %v962, %v1142
        %v1144 = vpop.f32.mrb[0].mxu0
        %v1145 = vpop.f32.mrb[0].mxu0
        %v1146 = vadd.f32 %v962, %v1145
        %v1147 = vpop.f32.mrb[0].mxu0
        %1148 = vmatprep.mubr.bf16.mxu0 0
        %1149 = vmatmul.mubr.bf16.gmra.mrb[0].mxu0 %v938
        %v1150 = vpop.f32.mrb[0].mxu0
        %v1151 = vadd.f32 %v962, %v1150
        %v1152 = vpop.f32.mrb[0].mxu0
        %v1153 = vpop.f32.mrb[0].mxu0
        %v1154 = vadd.f32 %v962, %v1153
        %v1155 = vpop.f32.mrb[0].mxu0
        %1156 = vmatprep.mubr.bf16.mxu0 0
        %1157 = vmatmul.mubr.bf16.gmra.mrb[0].mxu0 %v939
        %v1158 = vpop.f32.mrb[0].mxu0
        %v1159 = vadd.f32 %v962, %v1158
        %v1160 = vpop.f32.mrb[0].mxu0
        %v1161 = vpop.f32.mrb[0].mxu0
        %v1162 = vadd.f32 %v962, %v1161
        %v1163 = vpop.f32.mrb[0].mxu0
        %1164 = vmatprep.mubr.bf16.mxu0 0
        %1165 = vmatmul.mubr.bf16.gmra.mrb[0].mxu0 %v940
        %v1166 = vpop.f32.mrb[0].mxu0
        %v1167 = vadd.f32 %v962, %v1166
        %v1168 = vpop.f32.mrb[0].mxu0
        %v1169 = vpop.f32.mrb[0].mxu0
        %v1170 = vadd.f32 %v962, %v1169
        %v1171 = vpop.f32.mrb[0].mxu0
        %1172 = vdwg.mxu0
        %v1173 = vadd.f32 %v462, %v1047
        %v1174 = vadd.f32 %v463, %v1050
        %v1175 = vadd.f32 %v464, %v1055
        %v1176 = vadd.f32 %v465, %v1058
        %v1177 = vadd.f32 %v466, %v1063
        %v1178 = vadd.f32 %v467, %v1066
        %v1179 = vadd.f32 %v468, %v1071
        %v1180 = vadd.f32 %v469, %v1074
        %v1181 = vadd.f32 %v470, %v1079
        %v1182 = vadd.f32 %v471, %v1082
        %v1183 = vadd.f32 %v472, %v1087
        %v1184 = vadd.f32 %v473, %v1090
        %v1185 = vadd.f32 %v474, %v1095
        %v1186 = vadd.f32 %v475, %v1098
        %v1187 = vadd.f32 %v476, %v1103
        %v1188 = vadd.f32 %v477, %v1106
        %v1189 = vadd.f32 %v478, %v1111
        %v1190 = vadd.f32 %v479, %v1114
        %v1191 = vadd.f32 %v480, %v1119
        %v1192 = vadd.f32 %v481, %v1122
        %v1193 = vadd.f32 %v482, %v1127
        %v1194 = vadd.f32 %v483, %v1130
        %v1195 = vadd.f32 %v484, %v1135
        %v1196 = vadd.f32 %v485, %v1138
        %v1197 = vadd.f32 %v486, %v1143
        %v1198 = vadd.f32 %v487, %v1146
        %v1199 = vadd.f32 %v488, %v1151
        %v1200 = vadd.f32 %v489, %v1154
        %v1201 = vadd.f32 %v490, %v1159
        %v1202 = vadd.f32 %v491, %v1162
        %v1203 = vadd.f32 %v492, %v1167
        %v1204 = vadd.f32 %v493, %v1170
        %1205 = vst [vmem:[#allocation2] sm:$0xff] %v1173
        %1206 = vst [vmem:[#allocation2 + $0x8] sm:$0xff] %v1174
        %1207 = vst [vmem:[#allocation2 + $0x10] sm:$0xff] %v1175
        %1208 = vst [vmem:[#allocation2 + $0x18] sm:$0xff] %v1176
        %1209 = vst [vmem:[#allocation2 + $0x20] sm:$0xff] %v1177
        %1210 = vst [vmem:[#allocation2 + $0x28] sm:$0xff] %v1178
        %1211 = vst [vmem:[#allocation2 + $0x30] sm:$0xff] %v1179
        %1212 = vst [vmem:[#allocation2 + $0x38] sm:$0xff] %v1180
        %1213 = vst [vmem:[#allocation2 + $0x40] sm:$0xff] %v1181
        %1214 = vst [vmem:[#allocation2 + $0x48] sm:$0xff] %v1182
        %1215 = vst [vmem:[#allocation2 + $0x50] sm:$0xff] %v1183
        %1216 = vst [vmem:[#allocation2 + $0x58] sm:$0xff] %v1184
        %1217 = vst [vmem:[#allocation2 + $0x60] sm:$0xff] %v1185
        %1218 = vst [vmem:[#allocation2 + $0x68] sm:$0xff] %v1186
        %1219 = vst [vmem:[#allocation2 + $0x70] sm:$0xff] %v1187
        %1220 = vst [vmem:[#allocation2 + $0x78] sm:$0xff] %v1188
        %1221 = vst [vmem:[#allocation2 + $0x80] sm:$0xff] %v1189
        %1222 = vst [vmem:[#allocation2 + $0x88] sm:$0xff] %v1190
        %1223 = vst [vmem:[#allocation2 + $0x90] sm:$0xff] %v1191
        %1224 = vst [vmem:[#allocation2 + $0x98] sm:$0xff] %v1192
        %1225 = vst [vmem:[#allocation2 + $0xa0] sm:$0xff] %v1193
        %1226 = vst [vmem:[#allocation2 + $0xa8] sm:$0xff] %v1194
        %1227 = vst [vmem:[#allocation2 + $0xb0] sm:$0xff] %v1195
        %1228 = vst [vmem:[#allocation2 + $0xb8] sm:$0xff] %v1196
        %1229 = vst [vmem:[#allocation2 + $0xc0] sm:$0xff] %v1197
        %1230 = vst [vmem:[#allocation2 + $0xc8] sm:$0xff] %v1198
        %1231 = vst [vmem:[#allocation2 + $0xd0] sm:$0xff] %v1199
        %1232 = vst [vmem:[#allocation2 + $0xd8] sm:$0xff] %v1200
        %1233 = vst [vmem:[#allocation2 + $0xe0] sm:$0xff] %v1201
        %1234 = vst [vmem:[#allocation2 + $0xe8] sm:$0xff] %v1202
        %1235 = vst [vmem:[#allocation2 + $0xf0] sm:$0xff] %v1203
        %1236 = vst [vmem:[#allocation2 + $0xf8] sm:$0xff] %v1204
        %p1237 = scmp.eq.s32.totalorder %s32, 1
        // Predicated region
        $region61: #{_decoder_stack_call.1} parent=47 // pred_check
          %p1238 = pneg %p1237
        $region62: #{_decoder_stack_call.1} parent=47 // pred_check_branch
          %1240 = sbr.rel (%p1238) target = $region64
        $region63: #{_decoder_stack_call.1} parent=47 // pred_region
          %v1241 = vld [vmem:[%s5] sm:$0x1]
          %v1242 = vld [vmem:[%s6] sm:$0x1]
          %1243 = vadd.xlane.f32.xlu0 %v1173
          %v1244 = vpop.xlane.xlu0 %1243
          %1245 = vadd.xlane.f32.xlu0 %v1174
          %v1246 = vpop.xlane.xlu0 %1245
          %1247 = vadd.xlane.f32.xlu0 %v1175
          %v1248 = vpop.xlane.xlu0 %1247
          %1249 = vadd.xlane.f32.xlu0 %v1176
          %v1250 = vpop.xlane.xlu0 %1249
          %1251 = vadd.xlane.f32.xlu0 %v1177
          %v1252 = vpop.xlane.xlu0 %1251
          %1253 = vadd.xlane.f32.xlu0 %v1178
          %v1254 = vpop.xlane.xlu0 %1253
          %1255 = vadd.xlane.f32.xlu0 %v1179
          %v1256 = vpop.xlane.xlu0 %1255
          %1257 = vadd.xlane.f32.xlu0 %v1180
          %v1258 = vpop.xlane.xlu0 %1257
          %1259 = vadd.xlane.f32.xlu0 %v1181
          %v1260 = vpop.xlane.xlu0 %1259
          %1261 = vadd.xlane.f32.xlu0 %v1182
          %v1262 = vpop.xlane.xlu0 %1261
          %1263 = vadd.xlane.f32.xlu0 %v1183
          %v1264 = vpop.xlane.xlu0 %1263
          %1265 = vadd.xlane.f32.xlu0 %v1184
          %v1266 = vpop.xlane.xlu0 %1265
          %1267 = vadd.xlane.f32.xlu0 %v1185
          %v1268 = vpop.xlane.xlu0 %1267
          %1269 = vadd.xlane.f32.xlu0 %v1186
          %v1270 = vpop.xlane.xlu0 %1269
          %1271 = vadd.xlane.f32.xlu0 %v1187
          %v1272 = vpop.xlane.xlu0 %1271
          %1273 = vadd.xlane.f32.xlu0 %v1188
          %v1274 = vpop.xlane.xlu0 %1273
          %1275 = vadd.xlane.f32.xlu0 %v1189
          %v1276 = vpop.xlane.xlu0 %1275
          %1277 = vadd.xlane.f32.xlu0 %v1190
          %v1278 = vpop.xlane.xlu0 %1277
          %1279 = vadd.xlane.f32.xlu0 %v1191
          %v1280 = vpop.xlane.xlu0 %1279
          %1281 = vadd.xlane.f32.xlu0 %v1192
          %v1282 = vpop.xlane.xlu0 %1281
          %1283 = vadd.xlane.f32.xlu0 %v1193
          %v1284 = vpop.xlane.xlu0 %1283
          %1285 = vadd.xlane.f32.xlu0 %v1194
          %v1286 = vpop.xlane.xlu0 %1285
          %1287 = vadd.xlane.f32.xlu0 %v1195
          %v1288 = vpop.xlane.xlu0 %1287
          %1289 = vadd.xlane.f32.xlu0 %v1196
          %v1290 = vpop.xlane.xlu0 %1289
          %1291 = vadd.xlane.f32.xlu0 %v1197
          %v1292 = vpop.xlane.xlu0 %1291
          %1293 = vadd.xlane.f32.xlu0 %v1198
          %v1294 = vpop.xlane.xlu0 %1293
          %1295 = vadd.xlane.f32.xlu0 %v1199
          %v1296 = vpop.xlane.xlu0 %1295
          %1297 = vadd.xlane.f32.xlu0 %v1200
          %v1298 = vpop.xlane.xlu0 %1297
          %1299 = vadd.xlane.f32.xlu0 %v1201
          %v1300 = vpop.xlane.xlu0 %1299
          %1301 = vadd.xlane.f32.xlu0 %v1202
          %v1302 = vpop.xlane.xlu0 %1301
          %1303 = vadd.xlane.f32.xlu0 %v1203
          %v1304 = vpop.xlane.xlu0 %1303
          %1305 = vadd.xlane.f32.xlu0 %v1204
          %v1306 = vpop.xlane.xlu0 %1305
          %v1307 = vmul.f32 %v1244, %v560
          %v1308 = vmul.f32 %v1246, %v560
          %v1309 = vmul.f32 %v1248, %v560
          %v1310 = vmul.f32 %v1250, %v560
          %v1311 = vmul.f32 %v1252, %v560
          %v1312 = vmul.f32 %v1254, %v560
          %v1313 = vmul.f32 %v1256, %v560
          %v1314 = vmul.f32 %v1258, %v560
          %v1315 = vmul.f32 %v1260, %v560
          %v1316 = vmul.f32 %v1262, %v560
          %v1317 = vmul.f32 %v1264, %v560
          %v1318 = vmul.f32 %v1266, %v560
          %v1319 = vmul.f32 %v1268, %v560
          %v1320 = vmul.f32 %v1270, %v560
          %v1321 = vmul.f32 %v1272, %v560
          %v1322 = vmul.f32 %v1274, %v560
          %v1323 = vmul.f32 %v1276, %v560
          %v1324 = vmul.f32 %v1278, %v560
          %v1325 = vmul.f32 %v1280, %v560
          %v1326 = vmul.f32 %v1282, %v560
          %v1327 = vmul.f32 %v1284, %v560
          %v1328 = vmul.f32 %v1286, %v560
          %v1329 = vmul.f32 %v1288, %v560
          %v1330 = vmul.f32 %v1290, %v560
          %v1331 = vmul.f32 %v1292, %v560
          %v1332 = vmul.f32 %v1294, %v560
          %v1333 = vmul.f32 %v1296, %v560
          %v1334 = vmul.f32 %v1298, %v560
          %v1335 = vmul.f32 %v1300, %v560
          %v1336 = vmul.f32 %v1302, %v560
          %v1337 = vmul.f32 %v1304, %v560
          %v1338 = vmul.f32 %v1306, %v560
          %v1339 = vsub.f32 %v1173, %v1307
          %v1340 = vsub.f32 %v1174, %v1308
          %v1341 = vsub.f32 %v1175, %v1309
          %v1342 = vsub.f32 %v1176, %v1310
          %v1343 = vsub.f32 %v1177, %v1311
          %v1344 = vsub.f32 %v1178, %v1312
          %v1345 = vsub.f32 %v1179, %v1313
          %v1346 = vsub.f32 %v1180, %v1314
          %v1347 = vsub.f32 %v1181, %v1315
          %v1348 = vsub.f32 %v1182, %v1316
          %v1349 = vsub.f32 %v1183, %v1317
          %v1350 = vsub.f32 %v1184, %v1318
          %v1351 = vsub.f32 %v1185, %v1319
          %v1352 = vsub.f32 %v1186, %v1320
          %v1353 = vsub.f32 %v1187, %v1321
          %v1354 = vsub.f32 %v1188, %v1322
          %v1355 = vsub.f32 %v1189, %v1323
          %v1356 = vsub.f32 %v1190, %v1324
          %v1357 = vsub.f32 %v1191, %v1325
          %v1358 = vsub.f32 %v1192, %v1326
          %v1359 = vsub.f32 %v1193, %v1327
          %v1360 = vsub.f32 %v1194, %v1328
          %v1361 = vsub.f32 %v1195, %v1329
          %v1362 = vsub.f32 %v1196, %v1330
          %v1363 = vsub.f32 %v1197, %v1331
          %v1364 = vsub.f32 %v1198, %v1332
          %v1365 = vsub.f32 %v1199, %v1333
          %v1366 = vsub.f32 %v1200, %v1334
          %v1367 = vsub.f32 %v1201, %v1335
          %v1368 = vsub.f32 %v1202, %v1336
          %v1369 = vsub.f32 %v1203, %v1337
          %v1370 = vsub.f32 %v1204, %v1338
          %v1371 = vmul.f32 %v1339, %v1339
          %v1372 = vmul.f32 %v1340, %v1340
          %v1373 = vmul.f32 %v1341, %v1341
          %v1374 = vmul.f32 %v1342, %v1342
          %v1375 = vmul.f32 %v1343, %v1343
          %v1376 = vmul.f32 %v1344, %v1344
          %v1377 = vmul.f32 %v1345, %v1345
          %v1378 = vmul.f32 %v1346, %v1346
          %v1379 = vmul.f32 %v1347, %v1347
          %v1380 = vmul.f32 %v1348, %v1348
          %v1381 = vmul.f32 %v1349, %v1349
          %v1382 = vmul.f32 %v1350, %v1350
          %v1383 = vmul.f32 %v1351, %v1351
          %v1384 = vmul.f32 %v1352, %v1352
          %v1385 = vmul.f32 %v1353, %v1353
          %v1386 = vmul.f32 %v1354, %v1354
          %v1387 = vmul.f32 %v1355, %v1355
          %v1388 = vmul.f32 %v1356, %v1356
          %v1389 = vmul.f32 %v1357, %v1357
          %v1390 = vmul.f32 %v1358, %v1358
          %v1391 = vmul.f32 %v1359, %v1359
          %v1392 = vmul.f32 %v1360, %v1360
          %v1393 = vmul.f32 %v1361, %v1361
          %v1394 = vmul.f32 %v1362, %v1362
          %v1395 = vmul.f32 %v1363, %v1363
          %v1396 = vmul.f32 %v1364, %v1364
          %v1397 = vmul.f32 %v1365, %v1365
          %v1398 = vmul.f32 %v1366, %v1366
          %v1399 = vmul.f32 %v1367, %v1367
          %v1400 = vmul.f32 %v1368, %v1368
          %v1401 = vmul.f32 %v1369, %v1369
          %v1402 = vmul.f32 %v1370, %v1370
          %1403 = vadd.xlane.f32.xlu0 %v1371
          %v1404 = vpop.xlane.xlu0 %1403
          %1405 = vadd.xlane.f32.xlu0 %v1372
          %v1406 = vpop.xlane.xlu0 %1405
          %1407 = vadd.xlane.f32.xlu0 %v1373
          %v1408 = vpop.xlane.xlu0 %1407
          %1409 = vadd.xlane.f32.xlu0 %v1374
          %v1410 = vpop.xlane.xlu0 %1409
          %1411 = vadd.xlane.f32.xlu0 %v1375
          %v1412 = vpop.xlane.xlu0 %1411
          %1413 = vadd.xlane.f32.xlu0 %v1376
          %v1414 = vpop.xlane.xlu0 %1413
          %1415 = vadd.xlane.f32.xlu0 %v1377
          %v1416 = vpop.xlane.xlu0 %1415
          %1417 = vadd.xlane.f32.xlu0 %v1378
          %v1418 = vpop.xlane.xlu0 %1417
          %1419 = vadd.xlane.f32.xlu0 %v1379
          %v1420 = vpop.xlane.xlu0 %1419
          %1421 = vadd.xlane.f32.xlu0 %v1380
          %v1422 = vpop.xlane.xlu0 %1421
          %1423 = vadd.xlane.f32.xlu0 %v1381
          %v1424 = vpop.xlane.xlu0 %1423
          %1425 = vadd.xlane.f32.xlu0 %v1382
          %v1426 = vpop.xlane.xlu0 %1425
          %1427 = vadd.xlane.f32.xlu0 %v1383
          %v1428 = vpop.xlane.xlu0 %1427
          %1429 = vadd.xlane.f32.xlu0 %v1384
          %v1430 = vpop.xlane.xlu0 %1429
          %1431 = vadd.xlane.f32.xlu0 %v1385
          %v1432 = vpop.xlane.xlu0 %1431
          %1433 = vadd.xlane.f32.xlu0 %v1386
          %v1434 = vpop.xlane.xlu0 %1433
          %1435 = vadd.xlane.f32.xlu0 %v1387
          %v1436 = vpop.xlane.xlu0 %1435
          %1437 = vadd.xlane.f32.xlu0 %v1388
          %v1438 = vpop.xlane.xlu0 %1437
          %1439 = vadd.xlane.f32.xlu0 %v1389
          %v1440 = vpop.xlane.xlu0 %1439
          %1441 = vadd.xlane.f32.xlu0 %v1390
          %v1442 = vpop.xlane.xlu0 %1441
          %1443 = vadd.xlane.f32.xlu0 %v1391
          %v1444 = vpop.xlane.xlu0 %1443
          %1445 = vadd.xlane.f32.xlu0 %v1392
          %v1446 = vpop.xlane.xlu0 %1445
          %1447 = vadd.xlane.f32.xlu0 %v1393
          %v1448 = vpop.xlane.xlu0 %1447
          %1449 = vadd.xlane.f32.xlu0 %v1394
          %v1450 = vpop.xlane.xlu0 %1449
          %1451 = vadd.xlane.f32.xlu0 %v1395
          %v1452 = vpop.xlane.xlu0 %1451
          %1453 = vadd.xlane.f32.xlu0 %v1396
          %v1454 = vpop.xlane.xlu0 %1453
          %1455 = vadd.xlane.f32.xlu0 %v1397
          %v1456 = vpop.xlane.xlu0 %1455
          %1457 = vadd.xlane.f32.xlu0 %v1398
          %v1458 = vpop.xlane.xlu0 %1457
          %1459 = vadd.xlane.f32.xlu0 %v1399
          %v1460 = vpop.xlane.xlu0 %1459
          %1461 = vadd.xlane.f32.xlu0 %v1400
          %v1462 = vpop.xlane.xlu0 %1461
          %1463 = vadd.xlane.f32.xlu0 %v1401
          %v1464 = vpop.xlane.xlu0 %1463
          %1465 = vadd.xlane.f32.xlu0 %v1402
          %v1466 = vpop.xlane.xlu0 %1465
          %v1467 = vmul.f32 %v1404, %v560
          %v1468 = vmul.f32 %v1406, %v560
          %v1469 = vmul.f32 %v1408, %v560
          %v1470 = vmul.f32 %v1410, %v560
          %v1471 = vmul.f32 %v1412, %v560
          %v1472 = vmul.f32 %v1414, %v560
          %v1473 = vmul.f32 %v1416, %v560
          %v1474 = vmul.f32 %v1418, %v560
          %v1475 = vmul.f32 %v1420, %v560
          %v1476 = vmul.f32 %v1422, %v560
          %v1477 = vmul.f32 %v1424, %v560
          %v1478 = vmul.f32 %v1426, %v560
          %v1479 = vmul.f32 %v1428, %v560
          %v1480 = vmul.f32 %v1430, %v560
          %v1481 = vmul.f32 %v1432, %v560
          %v1482 = vmul.f32 %v1434, %v560
          %v1483 = vmul.f32 %v1436, %v560
          %v1484 = vmul.f32 %v1438, %v560
          %v1485 = vmul.f32 %v1440, %v560
          %v1486 = vmul.f32 %v1442, %v560
          %v1487 = vmul.f32 %v1444, %v560
          %v1488 = vmul.f32 %v1446, %v560
          %v1489 = vmul.f32 %v1448, %v560
          %v1490 = vmul.f32 %v1450, %v560
          %v1491 = vmul.f32 %v1452, %v560
          %v1492 = vmul.f32 %v1454, %v560
          %v1493 = vmul.f32 %v1456, %v560
          %v1494 = vmul.f32 %v1458, %v560
          %v1495 = vmul.f32 %v1460, %v560
          %v1496 = vmul.f32 %v1462, %v560
          %v1497 = vmul.f32 %v1464, %v560
          %v1498 = vmul.f32 %v1466, %v560
          %v1499 = vadd.f32 %v1467, 1e-05
          %v1500 = vadd.f32 %v1468, 1e-05
          %v1501 = vadd.f32 %v1469, 1e-05
          %v1502 = vadd.f32 %v1470, 1e-05
          %v1503 = vadd.f32 %v1471, 1e-05
          %v1504 = vadd.f32 %v1472, 1e-05
          %v1505 = vadd.f32 %v1473, 1e-05
          %v1506 = vadd.f32 %v1474, 1e-05
          %v1507 = vadd.f32 %v1475, 1e-05
          %v1508 = vadd.f32 %v1476, 1e-05
          %v1509 = vadd.f32 %v1477, 1e-05
          %v1510 = vadd.f32 %v1478, 1e-05
          %v1511 = vadd.f32 %v1479, 1e-05
          %v1512 = vadd.f32 %v1480, 1e-05
          %v1513 = vadd.f32 %v1481, 1e-05
          %v1514 = vadd.f32 %v1482, 1e-05
          %v1515 = vadd.f32 %v1483, 1e-05
          %v1516 = vadd.f32 %v1484, 1e-05
          %v1517 = vadd.f32 %v1485, 1e-05
          %v1518 = vadd.f32 %v1486, 1e-05
          %v1519 = vadd.f32 %v1487, 1e-05
          %v1520 = vadd.f32 %v1488, 1e-05
          %v1521 = vadd.f32 %v1489, 1e-05
          %v1522 = vadd.f32 %v1490, 1e-05
          %v1523 = vadd.f32 %v1491, 1e-05
          %v1524 = vadd.f32 %v1492, 1e-05
          %v1525 = vadd.f32 %v1493, 1e-05
          %v1526 = vadd.f32 %v1494, 1e-05
          %v1527 = vadd.f32 %v1495, 1e-05
          %v1528 = vadd.f32 %v1496, 1e-05
          %v1529 = vadd.f32 %v1497, 1e-05
          %v1530 = vadd.f32 %v1498, 1e-05
          %v1531 = vrsqrt.pop %v1499
          %v1532 = vrsqrt.pop %v1500
          %v1533 = vrsqrt.pop %v1501
          %v1534 = vrsqrt.pop %v1502
          %v1535 = vrsqrt.pop %v1503
          %v1536 = vrsqrt.pop %v1504
          %v1537 = vrsqrt.pop %v1505
          %v1538 = vrsqrt.pop %v1506
          %v1539 = vrsqrt.pop %v1507
          %v1540 = vrsqrt.pop %v1508
          %v1541 = vrsqrt.pop %v1509
          %v1542 = vrsqrt.pop %v1510
          %v1543 = vrsqrt.pop %v1511
          %v1544 = vrsqrt.pop %v1512
          %v1545 = vrsqrt.pop %v1513
          %v1546 = vrsqrt.pop %v1514
          %v1547 = vrsqrt.pop %v1515
          %v1548 = vrsqrt.pop %v1516
          %v1549 = vrsqrt.pop %v1517
          %v1550 = vrsqrt.pop %v1518
          %v1551 = vrsqrt.pop %v1519
          %v1552 = vrsqrt.pop %v1520
          %v1553 = vrsqrt.pop %v1521
          %v1554 = vrsqrt.pop %v1522
          %v1555 = vrsqrt.pop %v1523
          %v1556 = vrsqrt.pop %v1524
          %v1557 = vrsqrt.pop %v1525
          %v1558 = vrsqrt.pop %v1526
          %v1559 = vrsqrt.pop %v1527
          %v1560 = vrsqrt.pop %v1528
          %v1561 = vrsqrt.pop %v1529
          %v1562 = vrsqrt.pop %v1530
          %v1563 = vmul.f32 %v1339, %v1531
          %v1564 = vmul.f32 %v1340, %v1532
          %v1565 = vmul.f32 %v1341, %v1533
          %v1566 = vmul.f32 %v1342, %v1534
          %v1567 = vmul.f32 %v1343, %v1535
          %v1568 = vmul.f32 %v1344, %v1536
          %v1569 = vmul.f32 %v1345, %v1537
          %v1570 = vmul.f32 %v1346, %v1538
          %v1571 = vmul.f32 %v1347, %v1539
          %v1572 = vmul.f32 %v1348, %v1540
          %v1573 = vmul.f32 %v1349, %v1541
          %v1574 = vmul.f32 %v1350, %v1542
          %v1575 = vmul.f32 %v1351, %v1543
          %v1576 = vmul.f32 %v1352, %v1544
          %v1577 = vmul.f32 %v1353, %v1545
          %v1578 = vmul.f32 %v1354, %v1546
          %v1579 = vmul.f32 %v1355, %v1547
          %v1580 = vmul.f32 %v1356, %v1548
          %v1581 = vmul.f32 %v1357, %v1549
          %v1582 = vmul.f32 %v1358, %v1550
          %v1583 = vmul.f32 %v1359, %v1551
          %v1584 = vmul.f32 %v1360, %v1552
          %v1585 = vmul.f32 %v1361, %v1553
          %v1586 = vmul.f32 %v1362, %v1554
          %v1587 = vmul.f32 %v1363, %v1555
          %v1588 = vmul.f32 %v1364, %v1556
          %v1589 = vmul.f32 %v1365, %v1557
          %v1590 = vmul.f32 %v1366, %v1558
          %v1591 = vmul.f32 %v1367, %v1559
          %v1592 = vmul.f32 %v1368, %v1560
          %v1593 = vmul.f32 %v1369, %v1561
          %v1594 = vmul.f32 %v1370, %v1562
          %v1596 = vlaneseq
          %v1597 = vshrl.u32 %v1596, 7
          %v1598 = vsub.s32 0, %v1597
          %v1599 = vrot.slane %v1241, %v1598
          %v1601 = vmul.f32 %v1563, %v1599
          %v1602 = vmul.f32 %v1564, %v1599
          %v1603 = vmul.f32 %v1565, %v1599
          %v1604 = vmul.f32 %v1566, %v1599
          %v1605 = vmul.f32 %v1567, %v1599
          %v1606 = vmul.f32 %v1568, %v1599
          %v1607 = vmul.f32 %v1569, %v1599
          %v1608 = vmul.f32 %v1570, %v1599
          %v1609 = vmul.f32 %v1571, %v1599
          %v1610 = vmul.f32 %v1572, %v1599
          %v1611 = vmul.f32 %v1573, %v1599
          %v1612 = vmul.f32 %v1574, %v1599
          %v1613 = vmul.f32 %v1575, %v1599
          %v1614 = vmul.f32 %v1576, %v1599
          %v1615 = vmul.f32 %v1577, %v1599
          %v1616 = vmul.f32 %v1578, %v1599
          %v1617 = vmul.f32 %v1579, %v1599
          %v1618 = vmul.f32 %v1580, %v1599
          %v1619 = vmul.f32 %v1581, %v1599
          %v1620 = vmul.f32 %v1582, %v1599
          %v1621 = vmul.f32 %v1583, %v1599
          %v1622 = vmul.f32 %v1584, %v1599
          %v1623 = vmul.f32 %v1585, %v1599
          %v1624 = vmul.f32 %v1586, %v1599
          %v1625 = vmul.f32 %v1587, %v1599
          %v1626 = vmul.f32 %v1588, %v1599
          %v1627 = vmul.f32 %v1589, %v1599
          %v1628 = vmul.f32 %v1590, %v1599
          %v1629 = vmul.f32 %v1591, %v1599
          %v1630 = vmul.f32 %v1592, %v1599
          %v1631 = vmul.f32 %v1593, %v1599
          %v1632 = vmul.f32 %v1594, %v1599
          %v1634 = vlaneseq
          %v1635 = vshrl.u32 %v1634, 7
          %v1636 = vsub.s32 0, %v1635
          %v1637 = vrot.slane %v1242, %v1636
          %v1639 = vadd.f32 %v1601, %v1637
          %v1640 = vadd.f32 %v1602, %v1637
          %v1641 = vadd.f32 %v1603, %v1637
          %v1642 = vadd.f32 %v1604, %v1637
          %v1643 = vadd.f32 %v1605, %v1637
          %v1644 = vadd.f32 %v1606, %v1637
          %v1645 = vadd.f32 %v1607, %v1637
          %v1646 = vadd.f32 %v1608, %v1637
          %v1647 = vadd.f32 %v1609, %v1637
          %v1648 = vadd.f32 %v1610, %v1637
          %v1649 = vadd.f32 %v1611, %v1637
          %v1650 = vadd.f32 %v1612, %v1637
          %v1651 = vadd.f32 %v1613, %v1637
          %v1652 = vadd.f32 %v1614, %v1637
          %v1653 = vadd.f32 %v1615, %v1637
          %v1654 = vadd.f32 %v1616, %v1637
          %v1655 = vadd.f32 %v1617, %v1637
          %v1656 = vadd.f32 %v1618, %v1637
          %v1657 = vadd.f32 %v1619, %v1637
          %v1658 = vadd.f32 %v1620, %v1637
          %v1659 = vadd.f32 %v1621, %v1637
          %v1660 = vadd.f32 %v1622, %v1637
          %v1661 = vadd.f32 %v1623, %v1637
          %v1662 = vadd.f32 %v1624, %v1637
          %v1663 = vadd.f32 %v1625, %v1637
          %v1664 = vadd.f32 %v1626, %v1637
          %v1665 = vadd.f32 %v1627, %v1637
          %v1666 = vadd.f32 %v1628, %v1637
          %v1667 = vadd.f32 %v1629, %v1637
          %v1668 = vadd.f32 %v1630, %v1637
          %v1669 = vadd.f32 %v1631, %v1637
          %v1670 = vadd.f32 %v1632, %v1637
          %1671 = vst [vmem:[%s381] sm:$0xff] %v1639
          %1672 = vst [vmem:[%s381 + $0x8] sm:$0xff] %v1640
          %1673 = vst [vmem:[%s381 + $0x10] sm:$0xff] %v1641
          %1674 = vst [vmem:[%s381 + $0x18] sm:$0xff] %v1642
          %1675 = vst [vmem:[%s381 + $0x20] sm:$0xff] %v1643
          %1676 = vst [vmem:[%s381 + $0x28] sm:$0xff] %v1644
          %1677 = vst [vmem:[%s381 + $0x30] sm:$0xff] %v1645
          %1678 = vst [vmem:[%s381 + $0x38] sm:$0xff] %v1646
          %1679 = vst [vmem:[%s381 + $0x40] sm:$0xff] %v1647
          %1680 = vst [vmem:[%s381 + $0x48] sm:$0xff] %v1648
          %1681 = vst [vmem:[%s381 + $0x50] sm:$0xff] %v1649
          %1682 = vst [vmem:[%s381 + $0x58] sm:$0xff] %v1650
          %1683 = vst [vmem:[%s381 + $0x60] sm:$0xff] %v1651
          %1684 = vst [vmem:[%s381 + $0x68] sm:$0xff] %v1652
          %1685 = vst [vmem:[%s381 + $0x70] sm:$0xff] %v1653
          %1686 = vst [vmem:[%s381 + $0x78] sm:$0xff] %v1654
          %1687 = vst [vmem:[%s381 + $0x80] sm:$0xff] %v1655
          %1688 = vst [vmem:[%s381 + $0x88] sm:$0xff] %v1656
          %1689 = vst [vmem:[%s381 + $0x90] sm:$0xff] %v1657
          %1690 = vst [vmem:[%s381 + $0x98] sm:$0xff] %v1658
          %1691 = vst [vmem:[%s381 + $0xa0] sm:$0xff] %v1659
          %1692 = vst [vmem:[%s381 + $0xa8] sm:$0xff] %v1660
          %1693 = vst [vmem:[%s381 + $0xb0] sm:$0xff] %v1661
          %1694 = vst [vmem:[%s381 + $0xb8] sm:$0xff] %v1662
          %1695 = vst [vmem:[%s381 + $0xc0] sm:$0xff] %v1663
          %1696 = vst [vmem:[%s381 + $0xc8] sm:$0xff] %v1664
          %1697 = vst [vmem:[%s381 + $0xd0] sm:$0xff] %v1665
          %1698 = vst [vmem:[%s381 + $0xd8] sm:$0xff] %v1666
          %1699 = vst [vmem:[%s381 + $0xe0] sm:$0xff] %v1667
          %1700 = vst [vmem:[%s381 + $0xe8] sm:$0xff] %v1668
          %1701 = vst [vmem:[%s381 + $0xf0] sm:$0xff] %v1669
          %1702 = vst [vmem:[%s381 + $0xf8] sm:$0xff] %v1670
        $region64: #{_decoder_stack_call.1} parent=47 // pred_fallthru
          _
        %s1703 = sand.u32 %s219, 1
        %s1704 = scalar_lea.sflag [#allocation5], %s1703
        %s1705 = sand.u32 %s219, 1
        %s1706 = smul.addr %s1705, 256
        %s1707 = scalar_lea.vmem [#allocation8], %s1706
        // Predicated region
        $region65: #{_decoder_stack_call.1} parent=47 // pred_check
          %p1708 = pneg %p229
        $region66: #{_decoder_stack_call.1} parent=47 // pred_check_branch
          %1710 = sbr.rel (%p1708) target = $region68
        $region67: #{_decoder_stack_call.1} parent=47 // pred_region
          %s1711 = smul.u32 32, %s31
          %s1713 = ssub.s32 4096, 4096
          %1714 = vsyncadd %s1704, %s1713
          %s1715 = smul.addr %s1711, 128
          %s1716 = scalar_lea.hbm %s7, %s1715
          %s1717 = sshll.u32 %s1707, 4
          %s1718 = int_to_ptr.vmem [resolvable:$true] %s1717
          %1723 = dma.vmem_to_hbm [thread:$0]  %s1718, 4096, %s1716, %s1704, 128, 128, 8
        $region68: #{_decoder_stack_call.1} parent=47 // pred_fallthru
          _
      $region48: #{_decoder_stack_call.1} parent=5 // pred_fallthru
        _
      %p1724 = scmp.le.s32.totalorder 2, %s22
      // Predicated region
      $region69: #{_decoder_stack_call.1} parent=5 // pred_check
        %p1725 = pneg %p1724
      $region70: #{_decoder_stack_call.1} parent=5 // pred_check_branch
        %1727 = sbr.rel (%p1725) target = $region72
      $region71: #{_decoder_stack_call.1} parent=5 // pred_region
        %s1728 = ssub.s32 %s22, 2
        // Predicated region
        $region73: #{_decoder_stack_call.1} parent=71 // pred_check
          %p1729 = pneg %p235
        $region74: #{_decoder_stack_call.1} parent=71 // pred_check_branch
          %1731 = sbr.rel (%p1729) target = $region76
        $region75: #{_decoder_stack_call.1} parent=71 // pred_region
          %s1732 = sand.u32 %s220, 1
          %s1733 = scalar_lea.sflag [#allocation5], %s1732
          %s1734 = sand.u32 %s220, 1
          %s1735 = smul.addr %s1734, 256
          %s1736 = scalar_lea.vmem [#allocation8], %s1735
          %1737 = dma.done %s1733, 4096
        $region76: #{_decoder_stack_call.1} parent=71 // pred_fallthru
          _
      $region72: #{_decoder_stack_call.1} parent=5 // pred_fallthru
        _
    $region6: #{_decoder_stack_call.1} parent=1 // loop_footer
      %s26 = sadd.s32 1, %s22
    $region7: #{_decoder_stack_call.1} parent=1 // loop_footer_branch
      %21 = sbr.rel target = $region3
    $region8: #{_decoder_stack_call.1} parent=1 // loop_exit
      _
    %1738 = vsyncpa [#allocation4], 1
    %s1739 = scalar_lea.sflag [#allocation4], 1
    %1740 = vsyncpa %s1739, 1
    %1741 = vsyncpa [#allocation7], 1
    %s1742 = scalar_lea.sflag [#allocation7], 1
    %1743 = vsyncpa %s1742, 1
    %1744 = vsyncpa [#allocation5], 1
    %s1745 = scalar_lea.sflag [#allocation5], 1
    %1746 = vsyncpa %s1745, 1

</llo_original>
